<compile_context>
chip_gen: v6e
topology: v6e:2x2x1
jax: 0.10.0
libtpu: 0.0.40
codegen_flags: <defaults>
</compile_context>

<pallas_src>
import functools

import jax
import jax.numpy as jnp
from jax.experimental import pallas as pl
from jax.experimental.pallas import tpu as pltpu

# ---- small, TPU-friendly hyperparameters (consistent with the module) ----
H1 = 64            # hidden_size_1 (x_cont feature dim)
H2 = 64            # hidden_size_2 (x_spk feature dim)
D_MODEL = H1 + H2  # 128
H4 = 64            # hidden_size_4 (output dim of final Linear)
NHEAD = 2
DIM_FF = 128       # dim_feedforward
LN_EPS = 1e-5
B = 2
T = 8


def _encoder_kernel(x_ref, wqkv_ref, bqkv_ref, wo_ref, bo_ref,
                    g1_ref, be1_ref, w1_ref, bf1_ref, w2_ref, bf2_ref,
                    g2_ref, be2_ref, wl_ref, bl_ref, out_ref, *, batch, seq):
    f32, bf16 = jnp.float32, jnp.bfloat16
    d = x_ref.shape[-1]
    hd = d // NHEAD
    scale = 1.0 / (hd ** 0.5)

    x = x_ref[...].astype(f32)                     # (B*T, D), lane-dense
    x_b = x.astype(bf16)

    # --- fused Q/K/V projection: one wide (D, 3D) matmul ---
    qkv = jnp.dot(x_b, wqkv_ref[...], preferred_element_type=f32) + bqkv_ref[...]
    q = qkv[:, 0:d]
    k = qkv[:, d:2 * d]
    v = qkv[:, 2 * d:3 * d]

    # --- multi-head self-attention (dropout = identity), per batch item ---
    wo = wo_ref[...]                               # (D, D) bf16
    attn_blocks = []
    for b in range(batch):                         # static unroll (batch is tiny)
        r0 = b * seq
        qb = q[r0:r0 + seq]
        kb = k[r0:r0 + seq]
        vb = v[r0:r0 + seq]
        acc = jnp.zeros((seq, d), f32)
        for h in range(NHEAD):                     # static unroll, NHEAD=2
            c0 = h * hd
            qh = qb[:, c0:c0 + hd].astype(bf16)
            kh = kb[:, c0:c0 + hd].astype(bf16)
            vh = vb[:, c0:c0 + hd].astype(bf16)
            # scores: contract feature dims directly (no explicit transpose)
            s = jax.lax.dot_general(qh, kh, (((1,), (1,)), ((), ())),
                                    preferred_element_type=f32) * scale   # (T, T)
            s = s - jnp.max(s, axis=-1, keepdims=True)
            p = jnp.exp(s)
            p = p * pl.reciprocal(jnp.sum(p, axis=-1, keepdims=True), approx=True)
            oh = jnp.dot(p.astype(bf16), vh, preferred_element_type=f32)  # (T, hd)
            # fold head-concat into the output projection (row slice of Wo)
            acc = acc + jnp.dot(oh.astype(bf16), wo[c0:c0 + hd, :],
                                preferred_element_type=f32)
        attn_blocks.append(acc)
    attn = jnp.concatenate(attn_blocks, axis=0) + bo_ref[...]             # (B*T, D)

    # --- residual + LayerNorm 1 (f32) ---
    y = x + attn
    mu = jnp.mean(y, axis=-1, keepdims=True)
    var = jnp.mean((y - mu) ** 2, axis=-1, keepdims=True)
    y = (y - mu) * jax.lax.rsqrt(var + LN_EPS) * g1_ref[...] + be1_ref[...]

    # --- feed-forward (ReLU), dropout = identity ---
    hmid = jnp.dot(y.astype(bf16), w1_ref[...], preferred_element_type=f32) + bf1_ref[...]
    hmid = jnp.maximum(hmid, 0.0)
    ff = jnp.dot(hmid.astype(bf16), w2_ref[...], preferred_element_type=f32) + bf2_ref[...]

    # --- residual + LayerNorm 2 (f32) ---
    z = y + ff
    mu2 = jnp.mean(z, axis=-1, keepdims=True)
    var2 = jnp.mean((z - mu2) ** 2, axis=-1, keepdims=True)
    z = (z - mu2) * jax.lax.rsqrt(var2 + LN_EPS) * g2_ref[...] + be2_ref[...]

    # --- final Linear, padded to 128 output lanes (unmasked store) ---
    out = jnp.dot(z.astype(bf16), wl_ref[...], preferred_element_type=f32) + bl_ref[...]
    out_ref[...] = out.astype(out_ref.dtype)


def self_attention_encoder(x_spk, x_cont, params):
    (wq, bq, wk, bk, wv, bv, wo, bo,
     g1, be1, w1, bf1, w2, bf2, g2, be2, wl, bl) = params
    b, t, _ = x_cont.shape
    d = D_MODEL
    bt = b * t
    bf16 = jnp.bfloat16

    # Lane-dense input: concat + time-broadcast once, outside the kernel.
    x = jnp.concatenate(
        [x_cont, jnp.broadcast_to(x_spk[:, None, :], (b, t, H2))], axis=-1)
    x_flat = x.reshape(bt, d).astype(jnp.float32)

    # Fused QKV weights (bf16 MXU operands; biases stay f32).
    wqkv = jnp.concatenate([wq, wk, wv], axis=1).astype(bf16)        # (D, 3D)
    bqkv = jnp.concatenate([bq, bk, bv], axis=1).astype(jnp.float32)  # (1, 3D)

    # Pad the final projection to a 128-lane output for unmasked stores.
    n_out = ((H4 + 127) // 128) * 128
    wl_pad = jnp.zeros((d, n_out), jnp.float32).at[:, :H4].set(wl).astype(bf16)
    bl_pad = jnp.zeros((1, n_out), jnp.float32).at[:, :H4].set(bl)

    args = (x_flat, wqkv, bqkv,
            wo.astype(bf16), bo, g1, be1,
            w1.astype(bf16), bf1, w2.astype(bf16), bf2, g2, be2,
            wl_pad, bl_pad)

    hd = d // NHEAD
    flops = (2 * bt * d * 3 * d                         # fused QKV
             + b * NHEAD * (4 * t * t * hd + 2 * t * hd * d)  # attention + out proj
             + 4 * bt * d * DIM_FF                      # FFN
             + 2 * bt * d * n_out)                      # final linear
    transcendentals = b * NHEAD * t * (t + 1) + 2 * bt
    bytes_accessed = int(sum(a.size * a.dtype.itemsize for a in args)
                         + bt * n_out * 4)
    cost = pl.CostEstimate(flops=int(flops), transcendentals=int(transcendentals),
                           bytes_accessed=bytes_accessed)

    vmem_spec = pl.BlockSpec(memory_space=pltpu.MemorySpace.VMEM)
    out = pl.pallas_call(
        functools.partial(_encoder_kernel, batch=b, seq=t),
        out_shape=jax.ShapeDtypeStruct((bt, n_out), jnp.float32),
        in_specs=[vmem_spec] * len(args),
        out_specs=vmem_spec,
        cost_estimate=cost,
    )(*args)

    return out.reshape(b, t, n_out)[:, :, :H4].astype(x_cont.dtype)


def reference(x_spk, x_cont, params):
    """Plain-JAX mirror of the PyTorch forward (eval mode)."""
    (wq, bq, wk, bk, wv, bv, wo, bo,
     g1, be1, w1, bf1, w2, bf2, g2, be2, wl, bl) = params
    b, t, _ = x_cont.shape
    x = jnp.concatenate(
        [x_cont, jnp.broadcast_to(x_spk[:, None, :], (b, t, H2))], axis=-1)
    q = x @ wq + bq
    k = x @ wk + bk
    v = x @ wv + bv
    hd = D_MODEL // NHEAD

    def split(a):
        return a.reshape(b, t, NHEAD, hd).transpose(0, 2, 1, 3)
    qh, kh, vh = split(q), split(k), split(v)
    s = jnp.einsum("bhqd,bhkd->bhqk", qh, kh) / (hd ** 0.5)
    p = jax.nn.softmax(s, axis=-1)
    attn = jnp.einsum("bhqk,bhkd->bhqd", p, vh).transpose(0, 2, 1, 3).reshape(b, t, D_MODEL)
    attn = attn @ wo + bo

    def ln(a, g, bb):
        mu = jnp.mean(a, -1, keepdims=True)
        var = jnp.mean((a - mu) ** 2, -1, keepdims=True)
        return (a - mu) * jax.lax.rsqrt(var + LN_EPS) * g + bb

    y = ln(x + attn, g1, be1)
    ff = jnp.maximum(y @ w1 + bf1, 0.0) @ w2 + bf2
    z = ln(y + ff, g2, be2)
    return z @ wl + bl


def make_params(key):
    """Deterministic synthetic parameters (PyTorch-weight layout transposed for x @ W)."""
    ks = jax.random.split(key, 12)
    nrm = lambda k, shp, s=0.05: (s * jax.random.normal(k, shp)).astype(jnp.float32)
    d = D_MODEL
    params = (
        nrm(ks[0], (d, d)), nrm(ks[1], (1, d)),            # Wq, bq
        nrm(ks[2], (d, d)), nrm(ks[3], (1, d)),            # Wk, bk
        nrm(ks[4], (d, d)), nrm(ks[5], (1, d)),            # Wv, bv
        nrm(ks[6], (d, d)), nrm(ks[7], (1, d)),            # Wo, bo
        jnp.ones((1, d), jnp.float32), jnp.zeros((1, d), jnp.float32),    # LN1
        nrm(ks[8], (d, DIM_FF)), nrm(ks[9], (1, DIM_FF)),  # W1, b1
        nrm(ks[10], (DIM_FF, d)), jnp.zeros((1, d), jnp.float32),         # W2, b2
        jnp.ones((1, d), jnp.float32), jnp.zeros((1, d), jnp.float32),    # LN2
        nrm(ks[11], (d, H4)), jnp.zeros((1, H4), jnp.float32),            # Wl, bl
    )
    return params


if __name__ == "__main__":
    key = jax.random.PRNGKey(0)
    k_spk, k_cont, k_par = jax.random.split(key, 3)
    x_spk = jax.random.normal(k_spk, (B, H2), dtype=jnp.float32)
    x_cont = jax.random.normal(k_cont, (B, T, H1), dtype=jnp.float32)
    params = make_params(k_par)

    out = self_attention_encoder(x_spk, x_cont, params)
    out = jax.block_until_ready(out)

    ref = reference(x_spk, x_cont, params)
    assert out.shape == (B, T, H4), out.shape
    assert jnp.allclose(out, ref, atol=5e-2, rtol=5e-2), "mismatch vs JAX reference"
    print("KERNEL_OK")
</pallas_src>

<mosaic_0001>
module attributes {stable_mosaic.version = 11 : i64} {
  func.func @_encoder_kernel(%arg0: memref<16x128xf32, #tpu.memory_space<vmem>>, %arg1: memref<128x384xbf16, #tpu.memory_space<vmem>>, %arg2: memref<1x384xf32, #tpu.memory_space<vmem>>, %arg3: memref<128x128xbf16, #tpu.memory_space<vmem>>, %arg4: memref<1x128xf32, #tpu.memory_space<vmem>>, %arg5: memref<1x128xf32, #tpu.memory_space<vmem>>, %arg6: memref<1x128xf32, #tpu.memory_space<vmem>>, %arg7: memref<128x128xbf16, #tpu.memory_space<vmem>>, %arg8: memref<1x128xf32, #tpu.memory_space<vmem>>, %arg9: memref<128x128xbf16, #tpu.memory_space<vmem>>, %arg10: memref<1x128xf32, #tpu.memory_space<vmem>>, %arg11: memref<1x128xf32, #tpu.memory_space<vmem>>, %arg12: memref<1x128xf32, #tpu.memory_space<vmem>>, %arg13: memref<128x128xbf16, #tpu.memory_space<vmem>>, %arg14: memref<1x128xf32, #tpu.memory_space<vmem>>, %arg15: memref<16x128xf32, #tpu.memory_space<vmem>>) attributes {dimension_semantics = [], scalar_prefetch = 0 : i64, scratch_operands = 0 : i64, tpu.core_type = #tpu.core_type<tc>} {
    %c0 = arith.constant 0 : index
    %c0_0 = arith.constant 0 : index
    %0 = vector.load %arg0[%c0, %c0_0] : memref<16x128xf32, #tpu.memory_space<vmem>>, vector<16x128xf32>
    %1 = arith.truncf %0 : vector<16x128xf32> to vector<16x128xbf16>
    %c0_1 = arith.constant 0 : index
    %c0_2 = arith.constant 0 : index
    %2 = vector.load %arg1[%c0_1, %c0_2] : memref<128x384xbf16, #tpu.memory_space<vmem>>, vector<128x384xbf16>
    %cst = arith.constant dense<0.000000e+00> : vector<16x384xf32>
    %3 = tpu.matmul %1, %2, %cst {dimension_numbers = #tpu.dot_dimension_numbers<[1], [0], [0], [1], [0, 0, 1, 1], [], []>} : vector<16x128xbf16>, vector<128x384xbf16>, vector<16x384xf32> -> vector<16x384xf32>
    %c0_3 = arith.constant 0 : index
    %c0_4 = arith.constant 0 : index
    %4 = vector.load %arg2[%c0_3, %c0_4] : memref<1x384xf32, #tpu.memory_space<vmem>>, vector<1x384xf32>
    %5 = vector.broadcast %4 : vector<1x384xf32> to vector<16x384xf32>
    %6 = arith.addf %3, %5 : vector<16x384xf32>
    %7 = vector.extract_strided_slice %6 {offsets = [0, 0], sizes = [16, 128], strides = [1, 1]} : vector<16x384xf32> to vector<16x128xf32>
    %8 = vector.extract_strided_slice %6 {offsets = [0, 128], sizes = [16, 128], strides = [1, 1]} : vector<16x384xf32> to vector<16x128xf32>
    %9 = vector.extract_strided_slice %6 {offsets = [0, 256], sizes = [16, 128], strides = [1, 1]} : vector<16x384xf32> to vector<16x128xf32>
    %c0_5 = arith.constant 0 : index
    %c0_6 = arith.constant 0 : index
    %10 = vector.load %arg3[%c0_5, %c0_6] : memref<128x128xbf16, #tpu.memory_space<vmem>>, vector<128x128xbf16>
    %11 = vector.extract_strided_slice %7 {offsets = [0, 0], sizes = [8, 128], strides = [1, 1]} : vector<16x128xf32> to vector<8x128xf32>
    %12 = vector.extract_strided_slice %8 {offsets = [0, 0], sizes = [8, 128], strides = [1, 1]} : vector<16x128xf32> to vector<8x128xf32>
    %13 = vector.extract_strided_slice %9 {offsets = [0, 0], sizes = [8, 128], strides = [1, 1]} : vector<16x128xf32> to vector<8x128xf32>
    %cst_7 = arith.constant 0.000000e+00 : f32
    %14 = vector.broadcast %cst_7 : f32 to vector<8x128xf32>
    %15 = vector.extract_strided_slice %11 {offsets = [0, 0], sizes = [8, 64], strides = [1, 1]} : vector<8x128xf32> to vector<8x64xf32>
    %16 = arith.truncf %15 : vector<8x64xf32> to vector<8x64xbf16>
    %17 = vector.extract_strided_slice %12 {offsets = [0, 0], sizes = [8, 64], strides = [1, 1]} : vector<8x128xf32> to vector<8x64xf32>
    %18 = arith.truncf %17 : vector<8x64xf32> to vector<8x64xbf16>
    %19 = vector.extract_strided_slice %13 {offsets = [0, 0], sizes = [8, 64], strides = [1, 1]} : vector<8x128xf32> to vector<8x64xf32>
    %20 = arith.truncf %19 : vector<8x64xf32> to vector<8x64xbf16>
    %cst_8 = arith.constant dense<0.000000e+00> : vector<8x8xf32>
    %21 = tpu.matmul %16, %18, %cst_8 {dimension_numbers = #tpu.dot_dimension_numbers<[1], [1], [0], [0], [0, 0, 1, 0], [], []>} : vector<8x64xbf16>, vector<8x64xbf16>, vector<8x8xf32> -> vector<8x8xf32>
    %cst_9 = arith.constant 1.250000e-01 : f32
    %22 = vector.broadcast %cst_9 : f32 to vector<8x8xf32>
    %23 = arith.mulf %21, %22 : vector<8x8xf32>
    %cst_10 = arith.constant dense<0xFF800000> : vector<8xf32>
    %24 = vector.multi_reduction <maximumf>, %23, %cst_10 [1] : vector<8x8xf32> to vector<8xf32>
    %25 = vector.shape_cast %24 : vector<8xf32> to vector<8x1xf32>
    %26 = vector.broadcast %25 : vector<8x1xf32> to vector<8x8xf32>
    %27 = arith.subf %23, %26 : vector<8x8xf32>
    %28 = math.exp %27 : vector<8x8xf32>
    %cst_11 = arith.constant dense<0.000000e+00> : vector<8xf32>
    %29 = vector.multi_reduction <add>, %28, %cst_11 [1] : vector<8x8xf32> to vector<8xf32>
    %30 = vector.shape_cast %29 : vector<8xf32> to vector<8x1xf32>
    %31 = tpu.reciprocal %30 {approx = true} : vector<8x1xf32> -> vector<8x1xf32>
    %32 = vector.broadcast %31 : vector<8x1xf32> to vector<8x8xf32>
    %33 = arith.mulf %28, %32 : vector<8x8xf32>
    %34 = arith.truncf %33 : vector<8x8xf32> to vector<8x8xbf16>
    %cst_12 = arith.constant dense<0.000000e+00> : vector<8x64xf32>
    %35 = tpu.matmul %34, %20, %cst_12 {dimension_numbers = #tpu.dot_dimension_numbers<[1], [0], [0], [1], [0, 0, 1, 1], [], []>} : vector<8x8xbf16>, vector<8x64xbf16>, vector<8x64xf32> -> vector<8x64xf32>
    %36 = arith.truncf %35 : vector<8x64xf32> to vector<8x64xbf16>
    %37 = vector.extract_strided_slice %10 {offsets = [0, 0], sizes = [64, 128], strides = [1, 1]} : vector<128x128xbf16> to vector<64x128xbf16>
    %cst_13 = arith.constant dense<0.000000e+00> : vector<8x128xf32>
    %38 = tpu.matmul %36, %37, %cst_13 {dimension_numbers = #tpu.dot_dimension_numbers<[1], [0], [0], [1], [0, 0, 1, 1], [], []>} : vector<8x64xbf16>, vector<64x128xbf16>, vector<8x128xf32> -> vector<8x128xf32>
    %39 = arith.addf %14, %38 : vector<8x128xf32>
    %40 = vector.extract_strided_slice %11 {offsets = [0, 64], sizes = [8, 64], strides = [1, 1]} : vector<8x128xf32> to vector<8x64xf32>
    %41 = arith.truncf %40 : vector<8x64xf32> to vector<8x64xbf16>
    %42 = vector.extract_strided_slice %12 {offsets = [0, 64], sizes = [8, 64], strides = [1, 1]} : vector<8x128xf32> to vector<8x64xf32>
    %43 = arith.truncf %42 : vector<8x64xf32> to vector<8x64xbf16>
    %44 = vector.extract_strided_slice %13 {offsets = [0, 64], sizes = [8, 64], strides = [1, 1]} : vector<8x128xf32> to vector<8x64xf32>
    %45 = arith.truncf %44 : vector<8x64xf32> to vector<8x64xbf16>
    %cst_14 = arith.constant dense<0.000000e+00> : vector<8x8xf32>
    %46 = tpu.matmul %41, %43, %cst_14 {dimension_numbers = #tpu.dot_dimension_numbers<[1], [1], [0], [0], [0, 0, 1, 0], [], []>} : vector<8x64xbf16>, vector<8x64xbf16>, vector<8x8xf32> -> vector<8x8xf32>
    %cst_15 = arith.constant 1.250000e-01 : f32
    %47 = vector.broadcast %cst_15 : f32 to vector<8x8xf32>
    %48 = arith.mulf %46, %47 : vector<8x8xf32>
    %cst_16 = arith.constant dense<0xFF800000> : vector<8xf32>
    %49 = vector.multi_reduction <maximumf>, %48, %cst_16 [1] : vector<8x8xf32> to vector<8xf32>
    %50 = vector.shape_cast %49 : vector<8xf32> to vector<8x1xf32>
    %51 = vector.broadcast %50 : vector<8x1xf32> to vector<8x8xf32>
    %52 = arith.subf %48, %51 : vector<8x8xf32>
    %53 = math.exp %52 : vector<8x8xf32>
    %cst_17 = arith.constant dense<0.000000e+00> : vector<8xf32>
    %54 = vector.multi_reduction <add>, %53, %cst_17 [1] : vector<8x8xf32> to vector<8xf32>
    %55 = vector.shape_cast %54 : vector<8xf32> to vector<8x1xf32>
    %56 = tpu.reciprocal %55 {approx = true} : vector<8x1xf32> -> vector<8x1xf32>
    %57 = vector.broadcast %56 : vector<8x1xf32> to vector<8x8xf32>
    %58 = arith.mulf %53, %57 : vector<8x8xf32>
    %59 = arith.truncf %58 : vector<8x8xf32> to vector<8x8xbf16>
    %cst_18 = arith.constant dense<0.000000e+00> : vector<8x64xf32>
    %60 = tpu.matmul %59, %45, %cst_18 {dimension_numbers = #tpu.dot_dimension_numbers<[1], [0], [0], [1], [0, 0, 1, 1], [], []>} : vector<8x8xbf16>, vector<8x64xbf16>, vector<8x64xf32> -> vector<8x64xf32>
    %61 = arith.truncf %60 : vector<8x64xf32> to vector<8x64xbf16>
    %62 = vector.extract_strided_slice %10 {offsets = [64, 0], sizes = [64, 128], strides = [1, 1]} : vector<128x128xbf16> to vector<64x128xbf16>
    %cst_19 = arith.constant dense<0.000000e+00> : vector<8x128xf32>
    %63 = tpu.matmul %61, %62, %cst_19 {dimension_numbers = #tpu.dot_dimension_numbers<[1], [0], [0], [1], [0, 0, 1, 1], [], []>} : vector<8x64xbf16>, vector<64x128xbf16>, vector<8x128xf32> -> vector<8x128xf32>
    %64 = arith.addf %39, %63 : vector<8x128xf32>
    %65 = vector.extract_strided_slice %7 {offsets = [8, 0], sizes = [8, 128], strides = [1, 1]} : vector<16x128xf32> to vector<8x128xf32>
    %66 = vector.extract_strided_slice %8 {offsets = [8, 0], sizes = [8, 128], strides = [1, 1]} : vector<16x128xf32> to vector<8x128xf32>
    %67 = vector.extract_strided_slice %9 {offsets = [8, 0], sizes = [8, 128], strides = [1, 1]} : vector<16x128xf32> to vector<8x128xf32>
    %cst_20 = arith.constant 0.000000e+00 : f32
    %68 = vector.broadcast %cst_20 : f32 to vector<8x128xf32>
    %69 = vector.extract_strided_slice %65 {offsets = [0, 0], sizes = [8, 64], strides = [1, 1]} : vector<8x128xf32> to vector<8x64xf32>
    %70 = arith.truncf %69 : vector<8x64xf32> to vector<8x64xbf16>
    %71 = vector.extract_strided_slice %66 {offsets = [0, 0], sizes = [8, 64], strides = [1, 1]} : vector<8x128xf32> to vector<8x64xf32>
    %72 = arith.truncf %71 : vector<8x64xf32> to vector<8x64xbf16>
    %73 = vector.extract_strided_slice %67 {offsets = [0, 0], sizes = [8, 64], strides = [1, 1]} : vector<8x128xf32> to vector<8x64xf32>
    %74 = arith.truncf %73 : vector<8x64xf32> to vector<8x64xbf16>
    %cst_21 = arith.constant dense<0.000000e+00> : vector<8x8xf32>
    %75 = tpu.matmul %70, %72, %cst_21 {dimension_numbers = #tpu.dot_dimension_numbers<[1], [1], [0], [0], [0, 0, 1, 0], [], []>} : vector<8x64xbf16>, vector<8x64xbf16>, vector<8x8xf32> -> vector<8x8xf32>
    %cst_22 = arith.constant 1.250000e-01 : f32
    %76 = vector.broadcast %cst_22 : f32 to vector<8x8xf32>
    %77 = arith.mulf %75, %76 : vector<8x8xf32>
    %cst_23 = arith.constant dense<0xFF800000> : vector<8xf32>
    %78 = vector.multi_reduction <maximumf>, %77, %cst_23 [1] : vector<8x8xf32> to vector<8xf32>
    %79 = vector.shape_cast %78 : vector<8xf32> to vector<8x1xf32>
    %80 = vector.broadcast %79 : vector<8x1xf32> to vector<8x8xf32>
    %81 = arith.subf %77, %80 : vector<8x8xf32>
    %82 = math.exp %81 : vector<8x8xf32>
    %cst_24 = arith.constant dense<0.000000e+00> : vector<8xf32>
    %83 = vector.multi_reduction <add>, %82, %cst_24 [1] : vector<8x8xf32> to vector<8xf32>
    %84 = vector.shape_cast %83 : vector<8xf32> to vector<8x1xf32>
    %85 = tpu.reciprocal %84 {approx = true} : vector<8x1xf32> -> vector<8x1xf32>
    %86 = vector.broadcast %85 : vector<8x1xf32> to vector<8x8xf32>
    %87 = arith.mulf %82, %86 : vector<8x8xf32>
    %88 = arith.truncf %87 : vector<8x8xf32> to vector<8x8xbf16>
    %cst_25 = arith.constant dense<0.000000e+00> : vector<8x64xf32>
    %89 = tpu.matmul %88, %74, %cst_25 {dimension_numbers = #tpu.dot_dimension_numbers<[1], [0], [0], [1], [0, 0, 1, 1], [], []>} : vector<8x8xbf16>, vector<8x64xbf16>, vector<8x64xf32> -> vector<8x64xf32>
    %90 = arith.truncf %89 : vector<8x64xf32> to vector<8x64xbf16>
    %91 = vector.extract_strided_slice %10 {offsets = [0, 0], sizes = [64, 128], strides = [1, 1]} : vector<128x128xbf16> to vector<64x128xbf16>
    %cst_26 = arith.constant dense<0.000000e+00> : vector<8x128xf32>
    %92 = tpu.matmul %90, %91, %cst_26 {dimension_numbers = #tpu.dot_dimension_numbers<[1], [0], [0], [1], [0, 0, 1, 1], [], []>} : vector<8x64xbf16>, vector<64x128xbf16>, vector<8x128xf32> -> vector<8x128xf32>
    %93 = arith.addf %68, %92 : vector<8x128xf32>
    %94 = vector.extract_strided_slice %65 {offsets = [0, 64], sizes = [8, 64], strides = [1, 1]} : vector<8x128xf32> to vector<8x64xf32>
    %95 = arith.truncf %94 : vector<8x64xf32> to vector<8x64xbf16>
    %96 = vector.extract_strided_slice %66 {offsets = [0, 64], sizes = [8, 64], strides = [1, 1]} : vector<8x128xf32> to vector<8x64xf32>
    %97 = arith.truncf %96 : vector<8x64xf32> to vector<8x64xbf16>
    %98 = vector.extract_strided_slice %67 {offsets = [0, 64], sizes = [8, 64], strides = [1, 1]} : vector<8x128xf32> to vector<8x64xf32>
    %99 = arith.truncf %98 : vector<8x64xf32> to vector<8x64xbf16>
    %cst_27 = arith.constant dense<0.000000e+00> : vector<8x8xf32>
    %100 = tpu.matmul %95, %97, %cst_27 {dimension_numbers = #tpu.dot_dimension_numbers<[1], [1], [0], [0], [0, 0, 1, 0], [], []>} : vector<8x64xbf16>, vector<8x64xbf16>, vector<8x8xf32> -> vector<8x8xf32>
    %cst_28 = arith.constant 1.250000e-01 : f32
    %101 = vector.broadcast %cst_28 : f32 to vector<8x8xf32>
    %102 = arith.mulf %100, %101 : vector<8x8xf32>
    %cst_29 = arith.constant dense<0xFF800000> : vector<8xf32>
    %103 = vector.multi_reduction <maximumf>, %102, %cst_29 [1] : vector<8x8xf32> to vector<8xf32>
    %104 = vector.shape_cast %103 : vector<8xf32> to vector<8x1xf32>
    %105 = vector.broadcast %104 : vector<8x1xf32> to vector<8x8xf32>
    %106 = arith.subf %102, %105 : vector<8x8xf32>
    %107 = math.exp %106 : vector<8x8xf32>
    %cst_30 = arith.constant dense<0.000000e+00> : vector<8xf32>
    %108 = vector.multi_reduction <add>, %107, %cst_30 [1] : vector<8x8xf32> to vector<8xf32>
    %109 = vector.shape_cast %108 : vector<8xf32> to vector<8x1xf32>
    %110 = tpu.reciprocal %109 {approx = true} : vector<8x1xf32> -> vector<8x1xf32>
    %111 = vector.broadcast %110 : vector<8x1xf32> to vector<8x8xf32>
    %112 = arith.mulf %107, %111 : vector<8x8xf32>
    %113 = arith.truncf %112 : vector<8x8xf32> to vector<8x8xbf16>
    %cst_31 = arith.constant dense<0.000000e+00> : vector<8x64xf32>
    %114 = tpu.matmul %113, %99, %cst_31 {dimension_numbers = #tpu.dot_dimension_numbers<[1], [0], [0], [1], [0, 0, 1, 1], [], []>} : vector<8x8xbf16>, vector<8x64xbf16>, vector<8x64xf32> -> vector<8x64xf32>
    %115 = arith.truncf %114 : vector<8x64xf32> to vector<8x64xbf16>
    %116 = vector.extract_strided_slice %10 {offsets = [64, 0], sizes = [64, 128], strides = [1, 1]} : vector<128x128xbf16> to vector<64x128xbf16>
    %cst_32 = arith.constant dense<0.000000e+00> : vector<8x128xf32>
    %117 = tpu.matmul %115, %116, %cst_32 {dimension_numbers = #tpu.dot_dimension_numbers<[1], [0], [0], [1], [0, 0, 1, 1], [], []>} : vector<8x64xbf16>, vector<64x128xbf16>, vector<8x128xf32> -> vector<8x128xf32>
    %118 = arith.addf %93, %117 : vector<8x128xf32>
    %119 = tpu.concatenate %64, %118 in 0 : vector<8x128xf32>, vector<8x128xf32> -> vector<16x128xf32>
    %c0_33 = arith.constant 0 : index
    %c0_34 = arith.constant 0 : index
    %120 = vector.load %arg4[%c0_33, %c0_34] : memref<1x128xf32, #tpu.memory_space<vmem>>, vector<1x128xf32>
    %121 = vector.broadcast %120 : vector<1x128xf32> to vector<16x128xf32>
    %122 = arith.addf %119, %121 : vector<16x128xf32>
    %123 = arith.addf %0, %122 : vector<16x128xf32>
    %cst_35 = arith.constant dense<0.000000e+00> : vector<16xf32>
    %124 = vector.multi_reduction <add>, %123, %cst_35 [1] : vector<16x128xf32> to vector<16xf32>
    %125 = vector.shape_cast %124 : vector<16xf32> to vector<16x1xf32>
    %cst_36 = arith.constant 1.280000e+02 : f32
    %126 = vector.broadcast %cst_36 : f32 to vector<16x1xf32>
    %127 = arith.divf %125, %126 : vector<16x1xf32>
    %128 = vector.broadcast %127 : vector<16x1xf32> to vector<16x128xf32>
    %129 = arith.subf %123, %128 : vector<16x128xf32>
    %130 = arith.mulf %129, %129 : vector<16x128xf32>
    %cst_37 = arith.constant dense<0.000000e+00> : vector<16xf32>
    %131 = vector.multi_reduction <add>, %130, %cst_37 [1] : vector<16x128xf32> to vector<16xf32>
    %132 = vector.shape_cast %131 : vector<16xf32> to vector<16x1xf32>
    %cst_38 = arith.constant 1.280000e+02 : f32
    %133 = vector.broadcast %cst_38 : f32 to vector<16x1xf32>
    %134 = arith.divf %132, %133 : vector<16x1xf32>
    %135 = vector.broadcast %127 : vector<16x1xf32> to vector<16x128xf32>
    %136 = arith.subf %123, %135 : vector<16x128xf32>
    %cst_39 = arith.constant 9.99999974E-6 : f32
    %137 = vector.broadcast %cst_39 : f32 to vector<16x1xf32>
    %138 = arith.addf %134, %137 : vector<16x1xf32>
    %139 = math.rsqrt %138 : vector<16x1xf32>
    %140 = vector.broadcast %139 : vector<16x1xf32> to vector<16x128xf32>
    %141 = arith.mulf %136, %140 : vector<16x128xf32>
    %c0_40 = arith.constant 0 : index
    %c0_41 = arith.constant 0 : index
    %142 = vector.load %arg5[%c0_40, %c0_41] : memref<1x128xf32, #tpu.memory_space<vmem>>, vector<1x128xf32>
    %143 = vector.broadcast %142 : vector<1x128xf32> to vector<16x128xf32>
    %144 = arith.mulf %141, %143 : vector<16x128xf32>
    %c0_42 = arith.constant 0 : index
    %c0_43 = arith.constant 0 : index
    %145 = vector.load %arg6[%c0_42, %c0_43] : memref<1x128xf32, #tpu.memory_space<vmem>>, vector<1x128xf32>
    %146 = vector.broadcast %145 : vector<1x128xf32> to vector<16x128xf32>
    %147 = arith.addf %144, %146 : vector<16x128xf32>
    %148 = arith.truncf %147 : vector<16x128xf32> to vector<16x128xbf16>
    %c0_44 = arith.constant 0 : index
    %c0_45 = arith.constant 0 : index
    %149 = vector.load %arg7[%c0_44, %c0_45] : memref<128x128xbf16, #tpu.memory_space<vmem>>, vector<128x128xbf16>
    %cst_46 = arith.constant dense<0.000000e+00> : vector<16x128xf32>
    %150 = tpu.matmul %148, %149, %cst_46 {dimension_numbers = #tpu.dot_dimension_numbers<[1], [0], [0], [1], [0, 0, 1, 1], [], []>} : vector<16x128xbf16>, vector<128x128xbf16>, vector<16x128xf32> -> vector<16x128xf32>
    %c0_47 = arith.constant 0 : index
    %c0_48 = arith.constant 0 : index
    %151 = vector.load %arg8[%c0_47, %c0_48] : memref<1x128xf32, #tpu.memory_space<vmem>>, vector<1x128xf32>
    %152 = vector.broadcast %151 : vector<1x128xf32> to vector<16x128xf32>
    %153 = arith.addf %150, %152 : vector<16x128xf32>
    %cst_49 = arith.constant 0.000000e+00 : f32
    %154 = vector.broadcast %cst_49 : f32 to vector<16x128xf32>
    %155 = arith.maximumf %153, %154 : vector<16x128xf32>
    %156 = arith.truncf %155 : vector<16x128xf32> to vector<16x128xbf16>
    %c0_50 = arith.constant 0 : index
    %c0_51 = arith.constant 0 : index
    %157 = vector.load %arg9[%c0_50, %c0_51] : memref<128x128xbf16, #tpu.memory_space<vmem>>, vector<128x128xbf16>
    %cst_52 = arith.constant dense<0.000000e+00> : vector<16x128xf32>
    %158 = tpu.matmul %156, %157, %cst_52 {dimension_numbers = #tpu.dot_dimension_numbers<[1], [0], [0], [1], [0, 0, 1, 1], [], []>} : vector<16x128xbf16>, vector<128x128xbf16>, vector<16x128xf32> -> vector<16x128xf32>
    %c0_53 = arith.constant 0 : index
    %c0_54 = arith.constant 0 : index
    %159 = vector.load %arg10[%c0_53, %c0_54] : memref<1x128xf32, #tpu.memory_space<vmem>>, vector<1x128xf32>
    %160 = vector.broadcast %159 : vector<1x128xf32> to vector<16x128xf32>
    %161 = arith.addf %158, %160 : vector<16x128xf32>
    %162 = arith.addf %147, %161 : vector<16x128xf32>
    %cst_55 = arith.constant dense<0.000000e+00> : vector<16xf32>
    %163 = vector.multi_reduction <add>, %162, %cst_55 [1] : vector<16x128xf32> to vector<16xf32>
    %164 = vector.shape_cast %163 : vector<16xf32> to vector<16x1xf32>
    %cst_56 = arith.constant 1.280000e+02 : f32
    %165 = vector.broadcast %cst_56 : f32 to vector<16x1xf32>
    %166 = arith.divf %164, %165 : vector<16x1xf32>
    %167 = vector.broadcast %166 : vector<16x1xf32> to vector<16x128xf32>
    %168 = arith.subf %162, %167 : vector<16x128xf32>
    %169 = arith.mulf %168, %168 : vector<16x128xf32>
    %cst_57 = arith.constant dense<0.000000e+00> : vector<16xf32>
    %170 = vector.multi_reduction <add>, %169, %cst_57 [1] : vector<16x128xf32> to vector<16xf32>
    %171 = vector.shape_cast %170 : vector<16xf32> to vector<16x1xf32>
    %cst_58 = arith.constant 1.280000e+02 : f32
    %172 = vector.broadcast %cst_58 : f32 to vector<16x1xf32>
    %173 = arith.divf %171, %172 : vector<16x1xf32>
    %174 = vector.broadcast %166 : vector<16x1xf32> to vector<16x128xf32>
    %175 = arith.subf %162, %174 : vector<16x128xf32>
    %cst_59 = arith.constant 9.99999974E-6 : f32
    %176 = vector.broadcast %cst_59 : f32 to vector<16x1xf32>
    %177 = arith.addf %173, %176 : vector<16x1xf32>
    %178 = math.rsqrt %177 : vector<16x1xf32>
    %179 = vector.broadcast %178 : vector<16x1xf32> to vector<16x128xf32>
    %180 = arith.mulf %175, %179 : vector<16x128xf32>
    %c0_60 = arith.constant 0 : index
    %c0_61 = arith.constant 0 : index
    %181 = vector.load %arg11[%c0_60, %c0_61] : memref<1x128xf32, #tpu.memory_space<vmem>>, vector<1x128xf32>
    %182 = vector.broadcast %181 : vector<1x128xf32> to vector<16x128xf32>
    %183 = arith.mulf %180, %182 : vector<16x128xf32>
    %c0_62 = arith.constant 0 : index
    %c0_63 = arith.constant 0 : index
    %184 = vector.load %arg12[%c0_62, %c0_63] : memref<1x128xf32, #tpu.memory_space<vmem>>, vector<1x128xf32>
    %185 = vector.broadcast %184 : vector<1x128xf32> to vector<16x128xf32>
    %186 = arith.addf %183, %185 : vector<16x128xf32>
    %187 = arith.truncf %186 : vector<16x128xf32> to vector<16x128xbf16>
    %c0_64 = arith.constant 0 : index
    %c0_65 = arith.constant 0 : index
    %188 = vector.load %arg13[%c0_64, %c0_65] : memref<128x128xbf16, #tpu.memory_space<vmem>>, vector<128x128xbf16>
    %cst_66 = arith.constant dense<0.000000e+00> : vector<16x128xf32>
    %189 = tpu.matmul %187, %188, %cst_66 {dimension_numbers = #tpu.dot_dimension_numbers<[1], [0], [0], [1], [0, 0, 1, 1], [], []>} : vector<16x128xbf16>, vector<128x128xbf16>, vector<16x128xf32> -> vector<16x128xf32>
    %c0_67 = arith.constant 0 : index
    %c0_68 = arith.constant 0 : index
    %190 = vector.load %arg14[%c0_67, %c0_68] : memref<1x128xf32, #tpu.memory_space<vmem>>, vector<1x128xf32>
    %191 = vector.broadcast %190 : vector<1x128xf32> to vector<16x128xf32>
    %192 = arith.addf %189, %191 : vector<16x128xf32>
    %c0_69 = arith.constant 0 : index
    %c0_70 = arith.constant 0 : index
    %193 = vector.load %arg15[%c0_69, %c0_70] : memref<16x128xf32, #tpu.memory_space<vmem>>, vector<16x128xf32>
    tpu.vector_store %arg15[%c0_69, %c0_70], %192 {strides = array<i32>} : memref<16x128xf32, #tpu.memory_space<vmem>>, vector<16x128xf32>,
    return
  }
}

</mosaic_0001>

<llo_original>
// kernel: tpu_custom_call.1
$region0: #{tpu_custom_call.1}
  #allocation0 [shape = 'u32[]', space=smem, size = 0x4, offset = 0x4, fixed_abs, tag = 'smem constant byte address 0x4 - core index']
  #allocation1 [shape = 'u32[144,128]{1,0:T(1,128)}', space=vmem, size = 0x12000, scoped, tag = 'internal scratch']
  %s0 = inlined_call_operand.hbm [shape: f32[16,128], index: 0, kind: input, shape index: {}]
  %s1 = inlined_call_operand.hbm [shape: bf16[128,384], index: 1, kind: input, shape index: {}]
  %s2 = inlined_call_operand.vmem [shape: f32[1,384], index: 2, kind: input, shape index: {}]
  %s3 = inlined_call_operand.hbm [shape: bf16[128,128], index: 3, kind: input, shape index: {}]
  %s4 = inlined_call_operand.vmem [shape: f32[1,128], index: 4, kind: input, shape index: {}]
  %s5 = inlined_call_operand.vmem [shape: f32[1,128], index: 5, kind: input, shape index: {}]
  %s6 = inlined_call_operand.vmem [shape: f32[1,128], index: 6, kind: input, shape index: {}]
  %s7 = inlined_call_operand.hbm [shape: bf16[128,128], index: 7, kind: input, shape index: {}]
  %s8 = inlined_call_operand.vmem [shape: f32[1,128], index: 8, kind: input, shape index: {}]
  %s9 = inlined_call_operand.hbm [shape: bf16[128,128], index: 9, kind: input, shape index: {}]
  %s10 = inlined_call_operand.vmem [shape: f32[1,128], index: 10, kind: input, shape index: {}]
  %s11 = inlined_call_operand.vmem [shape: f32[1,128], index: 11, kind: input, shape index: {}]
  %s12 = inlined_call_operand.vmem [shape: f32[1,128], index: 12, kind: input, shape index: {}]
  %s13 = inlined_call_operand.hbm [shape: bf16[128,128], index: 13, kind: input, shape index: {}]
  %s14 = inlined_call_operand.vmem [shape: f32[1,128], index: 14, kind: input, shape index: {}]
  %s15 = inlined_call_operand.hbm [shape: f32[16,128], index: 15, kind: output, shape index: {}]
  %s16 = sld [smem:[#allocation0]]
  $region94: #{tpu_custom_call.1} parent=0
    _
  %s18 = ssub.s32 1, %s16
  %s19 = scalar_select 0, %s18, %s16
  $region1: #{tpu_custom_call.1} parent=0
    #allocation2 [shape = 'u8[8192]{0}', space=vmem, size = 0x2000, scoped, tag = 'input window, operand 0, single buffered']
    #allocation3 [shape = 's32[1]{0}', space=sflag, size = 0x4, scoped, tag = 'scoped memory for tpu_custom_call.1']
    #allocation4 [shape = 's32[1]{0}', space=sflag, size = 0x4, scoped, tag = 'scoped memory for tpu_custom_call.1']
    #allocation5 [shape = 'u8[98304]{0}', space=vmem, size = 0x18000, scoped, tag = 'input window, operand 1, single buffered']
    #allocation6 [shape = 's32[1]{0}', space=sflag, size = 0x4, scoped, tag = 'scoped memory for tpu_custom_call.1']
    #allocation7 [shape = 'u8[32768]{0}', space=vmem, size = 0x8000, scoped, tag = 'input window, operand 3, single buffered']
    #allocation8 [shape = 'u8[32768]{0}', space=vmem, size = 0x8000, scoped, tag = 'input window, operand 7, single buffered']
    #allocation9 [shape = 's32[1]{0}', space=sflag, size = 0x4, scoped, tag = 'scoped memory for tpu_custom_call.1']
    #allocation10 [shape = 'u8[32768]{0}', space=vmem, size = 0x8000, scoped, tag = 'input window, operand 9, single buffered']
    #allocation11 [shape = 'u8[32768]{0}', space=vmem, size = 0x8000, scoped, tag = 'input window, operand 13, single buffered']
    #allocation12 [shape = 's32[1]{0}', space=sflag, size = 0x4, scoped, tag = 'scoped memory for tpu_custom_call.1']
    #allocation13 [shape = 'u8[8192]{0}', space=vmem, size = 0x2000, scoped, tag = 'output window, operand 0, single buffered']
    %20 = vsyncpa [#allocation3], 0
    %21 = vsyncpa [#allocation6], 0
    %22 = vsyncpa [#allocation9], 0
    %23 = vsyncpa [#allocation12], 0
    %24 = vsyncpa [#allocation4], 0
    // Predicated region
    $region2: #{tpu_custom_call.1} parent=1 // pred_check
      _
    $region3: #{tpu_custom_call.1} parent=1 // pred_check_branch
      %26 = sbr.rel (0) target = $region5
    $region4: #{tpu_custom_call.1} parent=1 // pred_region
      %s28 = ssub.s32 256, 256
      %29 = vsyncadd [#allocation3], %s28
      %s30 = sshll.u32 [#allocation2], 4
      %s31 = int_to_ptr.vmem [resolvable:$true] %s30
      %36 = dma.hbm_to_vmem [thread:$0]  %s0, 256, %s31, [#allocation3], 128, 128, 8
    $region5: #{tpu_custom_call.1} parent=1 // pred_fallthru
      _
    // Predicated region
    $region6: #{tpu_custom_call.1} parent=1 // pred_check
      _
    $region7: #{tpu_custom_call.1} parent=1 // pred_check_branch
      %38 = sbr.rel (0) target = $region9
    $region8: #{tpu_custom_call.1} parent=1 // pred_region
      %s40 = ssub.s32 3072, 3072
      %41 = vsyncadd [#allocation6], %s40
      %s42 = sshll.u32 [#allocation5], 4
      %s43 = int_to_ptr.vmem [resolvable:$true] %s42
      %48 = dma.hbm_to_vmem [thread:$0]  %s1, 3072, %s43, [#allocation6], 192, 192, 12
    $region9: #{tpu_custom_call.1} parent=1 // pred_fallthru
      _
    // Predicated region
    $region10: #{tpu_custom_call.1} parent=1 // pred_check
      _
    $region11: #{tpu_custom_call.1} parent=1 // pred_check_branch
      %50 = sbr.rel (0) target = $region13
    $region12: #{tpu_custom_call.1} parent=1 // pred_region
      _
    $region13: #{tpu_custom_call.1} parent=1 // pred_fallthru
      _
    // Predicated region
    $region14: #{tpu_custom_call.1} parent=1 // pred_check
      _
    $region15: #{tpu_custom_call.1} parent=1 // pred_check_branch
      %52 = sbr.rel (0) target = $region17
    $region16: #{tpu_custom_call.1} parent=1 // pred_region
      %s54 = ssub.s32 1024, 1024
      %55 = vsyncadd [#allocation6], %s54
      %s56 = sshll.u32 [#allocation7], 4
      %s57 = int_to_ptr.vmem [resolvable:$true] %s56
      %62 = dma.hbm_to_vmem [thread:$0]  %s3, 1024, %s57, [#allocation6], 64, 64, 4
    $region17: #{tpu_custom_call.1} parent=1 // pred_fallthru
      _
    // Predicated region
    $region18: #{tpu_custom_call.1} parent=1 // pred_check
      _
    $region19: #{tpu_custom_call.1} parent=1 // pred_check_branch
      %64 = sbr.rel (0) target = $region21
    $region20: #{tpu_custom_call.1} parent=1 // pred_region
      _
    $region21: #{tpu_custom_call.1} parent=1 // pred_fallthru
      _
    // Predicated region
    $region22: #{tpu_custom_call.1} parent=1 // pred_check
      _
    $region23: #{tpu_custom_call.1} parent=1 // pred_check_branch
      %66 = sbr.rel (0) target = $region25
    $region24: #{tpu_custom_call.1} parent=1 // pred_region
      _
    $region25: #{tpu_custom_call.1} parent=1 // pred_fallthru
      _
    // Predicated region
    $region26: #{tpu_custom_call.1} parent=1 // pred_check
      _
    $region27: #{tpu_custom_call.1} parent=1 // pred_check_branch
      %68 = sbr.rel (0) target = $region29
    $region28: #{tpu_custom_call.1} parent=1 // pred_region
      _
    $region29: #{tpu_custom_call.1} parent=1 // pred_fallthru
      _
    // Predicated region
    $region30: #{tpu_custom_call.1} parent=1 // pred_check
      _
    $region31: #{tpu_custom_call.1} parent=1 // pred_check_branch
      %70 = sbr.rel (0) target = $region33
    $region32: #{tpu_custom_call.1} parent=1 // pred_region
      %s72 = ssub.s32 1024, 1024
      %73 = vsyncadd [#allocation9], %s72
      %s74 = sshll.u32 [#allocation8], 4
      %s75 = int_to_ptr.vmem [resolvable:$true] %s74
      %80 = dma.hbm_to_vmem [thread:$0]  %s7, 1024, %s75, [#allocation9], 64, 64, 4
    $region33: #{tpu_custom_call.1} parent=1 // pred_fallthru
      _
    // Predicated region
    $region34: #{tpu_custom_call.1} parent=1 // pred_check
      _
    $region35: #{tpu_custom_call.1} parent=1 // pred_check_branch
      %82 = sbr.rel (0) target = $region37
    $region36: #{tpu_custom_call.1} parent=1 // pred_region
      _
    $region37: #{tpu_custom_call.1} parent=1 // pred_fallthru
      _
    // Predicated region
    $region38: #{tpu_custom_call.1} parent=1 // pred_check
      _
    $region39: #{tpu_custom_call.1} parent=1 // pred_check_branch
      %84 = sbr.rel (0) target = $region41
    $region40: #{tpu_custom_call.1} parent=1 // pred_region
      %s86 = ssub.s32 1024, 1024
      %87 = vsyncadd [#allocation9], %s86
      %s88 = sshll.u32 [#allocation10], 4
      %s89 = int_to_ptr.vmem [resolvable:$true] %s88
      %94 = dma.hbm_to_vmem [thread:$0]  %s9, 1024, %s89, [#allocation9], 64, 64, 4
    $region41: #{tpu_custom_call.1} parent=1 // pred_fallthru
      _
    // Predicated region
    $region42: #{tpu_custom_call.1} parent=1 // pred_check
      _
    $region43: #{tpu_custom_call.1} parent=1 // pred_check_branch
      %96 = sbr.rel (0) target = $region45
    $region44: #{tpu_custom_call.1} parent=1 // pred_region
      _
    $region45: #{tpu_custom_call.1} parent=1 // pred_fallthru
      _
    // Predicated region
    $region46: #{tpu_custom_call.1} parent=1 // pred_check
      _
    $region47: #{tpu_custom_call.1} parent=1 // pred_check_branch
      %98 = sbr.rel (0) target = $region49
    $region48: #{tpu_custom_call.1} parent=1 // pred_region
      _
    $region49: #{tpu_custom_call.1} parent=1 // pred_fallthru
      _
    // Predicated region
    $region50: #{tpu_custom_call.1} parent=1 // pred_check
      _
    $region51: #{tpu_custom_call.1} parent=1 // pred_check_branch
      %100 = sbr.rel (0) target = $region53
    $region52: #{tpu_custom_call.1} parent=1 // pred_region
      _
    $region53: #{tpu_custom_call.1} parent=1 // pred_fallthru
      _
    // Predicated region
    $region54: #{tpu_custom_call.1} parent=1 // pred_check
      _
    $region55: #{tpu_custom_call.1} parent=1 // pred_check_branch
      %102 = sbr.rel (0) target = $region57
    $region56: #{tpu_custom_call.1} parent=1 // pred_region
      %s104 = ssub.s32 1024, 1024
      %105 = vsyncadd [#allocation12], %s104
      %s106 = sshll.u32 [#allocation11], 4
      %s107 = int_to_ptr.vmem [resolvable:$true] %s106
      %112 = dma.hbm_to_vmem [thread:$0]  %s13, 1024, %s107, [#allocation12], 64, 64, 4
    $region57: #{tpu_custom_call.1} parent=1 // pred_fallthru
      _
    // Predicated region
    $region58: #{tpu_custom_call.1} parent=1 // pred_check
      _
    $region59: #{tpu_custom_call.1} parent=1 // pred_check_branch
      %114 = sbr.rel (0) target = $region61
    $region60: #{tpu_custom_call.1} parent=1 // pred_region
      _
    $region61: #{tpu_custom_call.1} parent=1 // pred_fallthru
      _
    // Predicated region
    $region62: #{tpu_custom_call.1} parent=1 // pred_check
      _
    $region63: #{tpu_custom_call.1} parent=1 // pred_check_branch
      %116 = sbr.rel (0) target = $region65
    $region64: #{tpu_custom_call.1} parent=1 // pred_region
      %117 = dma.done [#allocation3], 256
    $region65: #{tpu_custom_call.1} parent=1 // pred_fallthru
      _
    // Predicated region
    $region66: #{tpu_custom_call.1} parent=1 // pred_check
      _
    $region67: #{tpu_custom_call.1} parent=1 // pred_check_branch
      %119 = sbr.rel (0) target = $region69
    $region68: #{tpu_custom_call.1} parent=1 // pred_region
      %120 = dma.done [#allocation6], 3072
    $region69: #{tpu_custom_call.1} parent=1 // pred_fallthru
      _
    // Predicated region
    $region70: #{tpu_custom_call.1} parent=1 // pred_check
      _
    $region71: #{tpu_custom_call.1} parent=1 // pred_check_branch
      %122 = sbr.rel (0) target = $region73
    $region72: #{tpu_custom_call.1} parent=1 // pred_region
      %123 = dma.done [#allocation6], 1024
    $region73: #{tpu_custom_call.1} parent=1 // pred_fallthru
      _
    // Predicated region
    $region74: #{tpu_custom_call.1} parent=1 // pred_check
      _
    $region75: #{tpu_custom_call.1} parent=1 // pred_check_branch
      %125 = sbr.rel (0) target = $region77
    $region76: #{tpu_custom_call.1} parent=1 // pred_region
      %126 = dma.done [#allocation9], 1024
    $region77: #{tpu_custom_call.1} parent=1 // pred_fallthru
      _
    // Predicated region
    $region78: #{tpu_custom_call.1} parent=1 // pred_check
      _
    $region79: #{tpu_custom_call.1} parent=1 // pred_check_branch
      %128 = sbr.rel (0) target = $region81
    $region80: #{tpu_custom_call.1} parent=1 // pred_region
      %129 = dma.done [#allocation9], 1024
    $region81: #{tpu_custom_call.1} parent=1 // pred_fallthru
      _
    // Predicated region
    $region82: #{tpu_custom_call.1} parent=1 // pred_check
      _
    $region83: #{tpu_custom_call.1} parent=1 // pred_check_branch
      %131 = sbr.rel (0) target = $region85
    $region84: #{tpu_custom_call.1} parent=1 // pred_region
      %132 = dma.done [#allocation12], 1024
    $region85: #{tpu_custom_call.1} parent=1 // pred_fallthru
      _
    %v134 = vld [vmem:[#allocation2] sm:$0xff]
    %v135 = vld [vmem:[#allocation2 + $0x8] sm:$0xff]
    %v136 = vpack.c.bf16 %v135, %v134
    %v137 = vld [vmem:[#allocation5] sm:$0xff]
    %v138 = vld [vmem:[#allocation5 + $0x8] sm:$0xf]
    %v139 = vld [vmem:[#allocation5 + $0xc] sm:$0xff]
    %v140 = vld [vmem:[#allocation5 + $0x14] sm:$0xf]
    %v141 = vld [vmem:[#allocation5 + $0x18] sm:$0xff]
    %v142 = vld [vmem:[#allocation5 + $0x20] sm:$0xf]
    %v143 = vld [vmem:[#allocation5 + $0x24] sm:$0xff]
    %v144 = vld [vmem:[#allocation5 + $0x2c] sm:$0xf]
    %v145 = vld [vmem:[#allocation5 + $0x30] sm:$0xff]
    %v146 = vld [vmem:[#allocation5 + $0x38] sm:$0xf]
    %v147 = vld [vmem:[#allocation5 + $0x3c] sm:$0xff]
    %v148 = vld [vmem:[#allocation5 + $0x44] sm:$0xf]
    %v149 = vld [vmem:[#allocation5 + $0x48] sm:$0xff]
    %v150 = vld [vmem:[#allocation5 + $0x50] sm:$0xf]
    %v151 = vld [vmem:[#allocation5 + $0x54] sm:$0xff]
    %v152 = vld [vmem:[#allocation5 + $0x5c] sm:$0xf]
    %v153 = vld [vmem:[#allocation5 + $0x60] sm:$0xff]
    %v154 = vld [vmem:[#allocation5 + $0x68] sm:$0xf]
    %v155 = vld [vmem:[#allocation5 + $0x6c] sm:$0xff]
    %v156 = vld [vmem:[#allocation5 + $0x74] sm:$0xf]
    %v157 = vld [vmem:[#allocation5 + $0x78] sm:$0xff]
    %v158 = vld [vmem:[#allocation5 + $0x80] sm:$0xf]
    %v159 = vld [vmem:[#allocation5 + $0x84] sm:$0xff]
    %v160 = vld [vmem:[#allocation5 + $0x8c] sm:$0xf]
    %v161 = vld [vmem:[#allocation5 + $0x90] sm:$0xff]
    %v162 = vld [vmem:[#allocation5 + $0x98] sm:$0xf]
    %v163 = vld [vmem:[#allocation5 + $0x9c] sm:$0xff]
    %v164 = vld [vmem:[#allocation5 + $0xa4] sm:$0xf]
    %v165 = vld [vmem:[#allocation5 + $0xa8] sm:$0xff]
    %v166 = vld [vmem:[#allocation5 + $0xb0] sm:$0xf]
    %v167 = vld [vmem:[#allocation5 + $0xb4] sm:$0xff]
    %v168 = vld [vmem:[#allocation5 + $0xbc] sm:$0xf]
    %v169 = vld [vmem:[%s2] sm:$0x7]
    %v171 = vlaneseq
    %v172 = vshrl.u32 %v171, 7
    %v173 = vsub.s32 0, %v172
    %v174 = vrot.slane %v169, %v173
    %v175 = vlaneseq
    %v176 = vshrl.u32 %v175, 7
    %v177 = vsub.s32 1, %v176
    %v178 = vrot.slane %v169, %v177
    %v179 = vlaneseq
    %v180 = vshrl.u32 %v179, 7
    %v181 = vsub.s32 2, %v180
    %v182 = vrot.slane %v169, %v181
    %v218 = vunpack.c.l.b16 %v137
    %v219 = vunpack.c.h.b16 %v137
    %v220 = vunpack.c.l.b16 %v138
    %v221 = vunpack.c.l.b16 %v139
    %v222 = vunpack.c.h.b16 %v139
    %v223 = vunpack.c.l.b16 %v140
    %v224 = vunpack.c.l.b16 %v141
    %v225 = vunpack.c.h.b16 %v141
    %v226 = vunpack.c.l.b16 %v142
    %v227 = vunpack.c.l.b16 %v143
    %v228 = vunpack.c.h.b16 %v143
    %v229 = vunpack.c.l.b16 %v144
    %v230 = vunpack.c.l.b16 %v145
    %v231 = vunpack.c.h.b16 %v145
    %v232 = vunpack.c.l.b16 %v146
    %v233 = vunpack.c.l.b16 %v147
    %v234 = vunpack.c.h.b16 %v147
    %v235 = vunpack.c.l.b16 %v148
    %v236 = vunpack.c.l.b16 %v149
    %v237 = vunpack.c.h.b16 %v149
    %v238 = vunpack.c.l.b16 %v150
    %v239 = vunpack.c.l.b16 %v151
    %v240 = vunpack.c.h.b16 %v151
    %v241 = vunpack.c.l.b16 %v152
    %v242 = vunpack.c.l.b16 %v153
    %v243 = vunpack.c.h.b16 %v153
    %v244 = vunpack.c.l.b16 %v154
    %v245 = vunpack.c.l.b16 %v155
    %v246 = vunpack.c.h.b16 %v155
    %v247 = vunpack.c.l.b16 %v156
    %v248 = vunpack.c.l.b16 %v157
    %v249 = vunpack.c.h.b16 %v157
    %v250 = vunpack.c.l.b16 %v158
    %v251 = vunpack.c.l.b16 %v159
    %v252 = vunpack.c.h.b16 %v159
    %v253 = vunpack.c.l.b16 %v160
    %v254 = vunpack.c.l.b16 %v161
    %v255 = vunpack.c.h.b16 %v161
    %v256 = vunpack.c.l.b16 %v162
    %v257 = vunpack.c.l.b16 %v163
    %v258 = vunpack.c.h.b16 %v163
    %v259 = vunpack.c.l.b16 %v164
    %v260 = vunpack.c.l.b16 %v165
    %v261 = vunpack.c.h.b16 %v165
    %v262 = vunpack.c.l.b16 %v166
    %v263 = vunpack.c.l.b16 %v167
    %v264 = vunpack.c.h.b16 %v167
    %v265 = vunpack.c.l.b16 %v168
    %v266 = vpack.c.b16 %v221, %v218
    %v267 = vpack.c.b16 %v222, %v219
    %v268 = vpack.c.b16 %v223, %v220
    %v269 = vpack.c.b16 %v227, %v224
    %v270 = vpack.c.b16 %v228, %v225
    %v271 = vpack.c.b16 %v229, %v226
    %v272 = vpack.c.b16 %v233, %v230
    %v273 = vpack.c.b16 %v234, %v231
    %v274 = vpack.c.b16 %v235, %v232
    %v275 = vpack.c.b16 %v239, %v236
    %v276 = vpack.c.b16 %v240, %v237
    %v277 = vpack.c.b16 %v241, %v238
    %v278 = vpack.c.b16 %v245, %v242
    %v279 = vpack.c.b16 %v246, %v243
    %v280 = vpack.c.b16 %v247, %v244
    %v281 = vpack.c.b16 %v251, %v248
    %v282 = vpack.c.b16 %v252, %v249
    %v283 = vpack.c.b16 %v253, %v250
    %v284 = vpack.c.b16 %v257, %v254
    %v285 = vpack.c.b16 %v258, %v255
    %v286 = vpack.c.b16 %v259, %v256
    %v287 = vpack.c.b16 %v263, %v260
    %v288 = vpack.c.b16 %v264, %v261
    %v289 = vpack.c.b16 %v265, %v262
    %314 = vmatprep.subr.bf16.mxu0 %v288
    %315 = vmatpush1.bf16.msra.mxu0 %v287
    %316 = vmatprep.subr.bf16.mxu0 %v285
    %317 = vmatpush1.bf16.msra.mxu0 %v284
    %318 = vmatprep.subr.bf16.mxu0 %v282
    %319 = vmatpush1.bf16.msra.mxu0 %v281
    %320 = vmatprep.subr.bf16.mxu0 %v279
    %321 = vmatpush1.bf16.msra.mxu0 %v278
    %322 = vmatprep.subr.bf16.mxu0 %v276
    %323 = vmatpush1.bf16.msra.mxu0 %v275
    %324 = vmatprep.subr.bf16.mxu0 %v273
    %325 = vmatpush1.bf16.msra.mxu0 %v272
    %326 = vmatprep.subr.bf16.mxu0 %v270
    %327 = vmatpush1.bf16.msra.mxu0 %v269
    %328 = vmatprep.subr.bf16.mxu0 %v267
    %329 = vmatpush1.bf16.msra.mxu0 %v266
    %330 = vmatprep.subr.bf16.mxu0 0
    %331 = vmatpush2.bf16.msra.mxu0 0
    %332 = vmatprep.subr.bf16.mxu0 0
    %333 = vmatpush2.bf16.msra.mxu0 0
    %334 = vmatprep.subr.bf16.mxu0 0
    %335 = vmatpush2.bf16.msra.mxu0 0
    %336 = vmatprep.subr.bf16.mxu0 0
    %337 = vmatpush2.bf16.msra.mxu0 0
    %338 = vmatprep.subr.bf16.mxu0 0
    %339 = vmatpush2.bf16.msra.mxu0 0
    %340 = vmatprep.subr.bf16.mxu0 0
    %341 = vmatpush2.bf16.msra.mxu0 0
    %342 = vmatprep.subr.bf16.mxu0 0
    %343 = vmatpush2.bf16.msra.mxu0 0
    %344 = vmatprep.subr.bf16.mxu0 0
    %345 = vmatpush2.bf16.msra.mxu0 0
    %346 = vmatprep.mubr.bf16.mxu0 0
    %347 = vmatmul.mubr.bf16.gmra.mxu0 %v136
    %v348 = vpop.f32.mrf.mxu0
    %v349 = vadd.f32 %v174, %v348
    %v350 = vpop.f32.mrf.mxu0
    %v351 = vadd.f32 %v178, %v350
    %v352 = vpop.f32.mrf.mxu0
    %v353 = vadd.f32 %v174, %v352
    %v354 = vpop.f32.mrf.mxu0
    %v355 = vadd.f32 %v178, %v354
    %356 = vdwg.mxu0
    %357 = vmatprep.subr.bf16.mxu0 0
    %358 = vmatpush1.bf16.msra.mxu0 %v289
    %359 = vmatprep.subr.bf16.mxu0 0
    %360 = vmatpush1.bf16.msra.mxu0 %v286
    %361 = vmatprep.subr.bf16.mxu0 0
    %362 = vmatpush1.bf16.msra.mxu0 %v283
    %363 = vmatprep.subr.bf16.mxu0 0
    %364 = vmatpush1.bf16.msra.mxu0 %v280
    %365 = vmatprep.subr.bf16.mxu0 0
    %366 = vmatpush1.bf16.msra.mxu0 %v277
    %367 = vmatprep.subr.bf16.mxu0 0
    %368 = vmatpush1.bf16.msra.mxu0 %v274
    %369 = vmatprep.subr.bf16.mxu0 0
    %370 = vmatpush1.bf16.msra.mxu0 %v271
    %371 = vmatprep.subr.bf16.mxu0 0
    %372 = vmatpush1.bf16.msra.mxu0 %v268
    %373 = vmatprep.subr.bf16.mxu0 0
    %374 = vmatpush2.bf16.msra.mxu0 0
    %375 = vmatprep.subr.bf16.mxu0 0
    %376 = vmatpush2.bf16.msra.mxu0 0
    %377 = vmatprep.subr.bf16.mxu0 0
    %378 = vmatpush2.bf16.msra.mxu0 0
    %379 = vmatprep.subr.bf16.mxu0 0
    %380 = vmatpush2.bf16.msra.mxu0 0
    %381 = vmatprep.subr.bf16.mxu0 0
    %382 = vmatpush2.bf16.msra.mxu0 0
    %383 = vmatprep.subr.bf16.mxu0 0
    %384 = vmatpush2.bf16.msra.mxu0 0
    %385 = vmatprep.subr.bf16.mxu0 0
    %386 = vmatpush2.bf16.msra.mxu0 0
    %387 = vmatprep.subr.bf16.mxu0 0
    %388 = vmatpush2.bf16.msra.mxu0 0
    %389 = vmatprep.mubr.bf16.mxu0 0
    %390 = vmatmul.mubr.bf16.gmra.mxu0 %v136
    %v391 = vpop.f32.mrf.mxu0
    %v392 = vadd.f32 %v182, %v391
    %v393 = vpop.f32.mrf.mxu0
    %v394 = vpop.f32.mrf.mxu0
    %v395 = vadd.f32 %v182, %v394
    %v396 = vpop.f32.mrf.mxu0
    %397 = vdwg.mxu0
    %v398 = vld [vmem:[#allocation7] sm:$0xf]
    %v399 = vld [vmem:[#allocation7 + $0x4] sm:$0xf]
    %v400 = vld [vmem:[#allocation7 + $0x8] sm:$0xf]
    %v401 = vld [vmem:[#allocation7 + $0xc] sm:$0xf]
    %v402 = vld [vmem:[#allocation7 + $0x10] sm:$0xf]
    %v403 = vld [vmem:[#allocation7 + $0x14] sm:$0xf]
    %v404 = vld [vmem:[#allocation7 + $0x18] sm:$0xf]
    %v405 = vld [vmem:[#allocation7 + $0x1c] sm:$0xf]
    %v406 = vld [vmem:[#allocation7 + $0x20] sm:$0xf]
    %v407 = vld [vmem:[#allocation7 + $0x24] sm:$0xf]
    %v408 = vld [vmem:[#allocation7 + $0x28] sm:$0xf]
    %v409 = vld [vmem:[#allocation7 + $0x2c] sm:$0xf]
    %v410 = vld [vmem:[#allocation7 + $0x30] sm:$0xf]
    %v411 = vld [vmem:[#allocation7 + $0x34] sm:$0xf]
    %v412 = vld [vmem:[#allocation7 + $0x38] sm:$0xf]
    %v413 = vld [vmem:[#allocation7 + $0x3c] sm:$0xf]
    %v414 = vpack.c.bf16 %v349, %v349
    %v415 = vpack.c.bf16 %v351, %v351
    %v416 = vpack.c.bf16 %v392, %v392
    %vm417 = vcmask 523264
    %v419 = vsel %vm417, %v414, 0
    %v422 = vsel %vm417, %v415, 0
    %424 = vmatprep.subr.bf16.mxu0 0
    %425 = vmatpush1.bf16.xpose.msra.mxu0 0
    %426 = vmatprep.subr.bf16.mxu0 0
    %427 = vmatpush1.bf16.xpose.msra.mxu0 0
    %428 = vmatprep.subr.bf16.mxu0 0
    %429 = vmatpush1.bf16.xpose.msra.mxu0 0
    %430 = vmatprep.subr.bf16.mxu0 0
    %431 = vmatpush1.bf16.xpose.msra.mxu0 0
    %432 = vmatprep.subr.bf16.mxu0 0
    %433 = vmatpush1.bf16.xpose.msra.mxu0 0
    %434 = vmatprep.subr.bf16.mxu0 0
    %435 = vmatpush1.bf16.xpose.msra.mxu0 0
    %436 = vmatprep.subr.bf16.mxu0 0
    %437 = vmatpush1.bf16.xpose.msra.mxu0 0
    %438 = vmatprep.subr.bf16.mxu0 0
    %439 = vmatpush1.bf16.xpose.msra.mxu0 %v422
    %440 = vmatprep.subr.bf16.mxu0 0
    %441 = vmatpush2.bf16.xpose.msra.mxu0 0
    %442 = vmatprep.subr.bf16.mxu0 0
    %443 = vmatpush2.bf16.xpose.msra.mxu0 0
    %444 = vmatprep.subr.bf16.mxu0 0
    %445 = vmatpush2.bf16.xpose.msra.mxu0 0
    %446 = vmatprep.subr.bf16.mxu0 0
    %447 = vmatpush2.bf16.xpose.msra.mxu0 0
    %448 = vmatprep.subr.bf16.mxu0 0
    %449 = vmatpush2.bf16.xpose.msra.mxu0 0
    %450 = vmatprep.subr.bf16.mxu0 0
    %451 = vmatpush2.bf16.xpose.msra.mxu0 0
    %452 = vmatprep.subr.bf16.mxu0 0
    %453 = vmatpush2.bf16.xpose.msra.mxu0 0
    %454 = vmatprep.subr.bf16.mxu0 0
    %455 = vmatpush2.bf16.xpose.msra.mxu0 0
    %456 = vmatprep.mubr.bf16.mxu0 0
    %457 = vmatmul.mubr.bf16.gmra.mxu0 %v419
    %v458 = vpop.f32.mrf.mxu0
    %v459 = vadd.f32 0.0, %v458
    %v460 = vpop.f32.mrf.mxu0
    %v461 = vpop.f32.mrf.mxu0
    %v462 = vpop.f32.mrf.mxu0
    %463 = vdwg.mxu0
    %v464 = vmul.f32 %v459, 0.125
    %vm465 = vcmask 64512
    %v466 = vsel %vm465, %v464, -inf
    %467 = vmax.xlane.f32.xlu0 %v466
    %v468 = vpop.xlane.xlu0 %467
    %v469 = vsub.f32 %v464, %v468
    %v470 = vmul.f32 %v469, 1.442695
    %v471 = vpow.pop %v470
    %v472 = vsel %vm465, %v471, 0.0
    %473 = vadd.xlane.f32.xlu0 %v472
    %v474 = vpop.xlane.xlu0 %473
    %v475 = vrcp.pop %v474
    %v476 = vmul.f32 %v471, %v475
    %v477 = vpack.c.bf16 %v476, %v476
    %v479 = vsel %vm465, %v477, 0
    %vm481 = vcmask 1043456
    %v483 = vsel %vm481, %v416, 0
    %485 = vmatprep.subr.bf16.mxu0 0
    %486 = vmatpush1.bf16.msra.mxu0 0
    %487 = vmatprep.subr.bf16.mxu0 0
    %488 = vmatpush1.bf16.msra.mxu0 0
    %489 = vmatprep.subr.bf16.mxu0 0
    %490 = vmatpush1.bf16.msra.mxu0 0
    %491 = vmatprep.subr.bf16.mxu0 0
    %492 = vmatpush1.bf16.msra.mxu0 0
    %493 = vmatprep.subr.bf16.mxu0 0
    %494 = vmatpush1.bf16.msra.mxu0 0
    %495 = vmatprep.subr.bf16.mxu0 0
    %496 = vmatpush1.bf16.msra.mxu0 0
    %497 = vmatprep.subr.bf16.mxu0 0
    %498 = vmatpush1.bf16.msra.mxu0 0
    %499 = vmatprep.subr.bf16.mxu0 0
    %500 = vmatpush1.bf16.msra.mxu0 %v483
    %501 = vmatprep.subr.bf16.mxu0 0
    %502 = vmatpush2.bf16.msra.mxu0 0
    %503 = vmatprep.subr.bf16.mxu0 0
    %504 = vmatpush2.bf16.msra.mxu0 0
    %505 = vmatprep.subr.bf16.mxu0 0
    %506 = vmatpush2.bf16.msra.mxu0 0
    %507 = vmatprep.subr.bf16.mxu0 0
    %508 = vmatpush2.bf16.msra.mxu0 0
    %509 = vmatprep.subr.bf16.mxu0 0
    %510 = vmatpush2.bf16.msra.mxu0 0
    %511 = vmatprep.subr.bf16.mxu0 0
    %512 = vmatpush2.bf16.msra.mxu0 0
    %513 = vmatprep.subr.bf16.mxu0 0
    %514 = vmatpush2.bf16.msra.mxu0 0
    %515 = vmatprep.subr.bf16.mxu0 0
    %516 = vmatpush2.bf16.msra.mxu0 0
    %517 = vmatprep.mubr.bf16.mxu0 0
    %518 = vmatmul.mubr.bf16.gmra.mxu0 %v479
    %v519 = vpop.f32.mrf.mxu0
    %v520 = vadd.f32 0.0, %v519
    %v521 = vpop.f32.mrf.mxu0
    %v522 = vpop.f32.mrf.mxu0
    %v523 = vpop.f32.mrf.mxu0
    %524 = vdwg.mxu0
    %v525 = vpack.c.bf16 %v520, %v520
    %527 = vrot.lane.b32.xlu0 %v414, 64
    %v528 = vpop.permute.xlu0 %527
    %530 = vrot.lane.b32.xlu0 %v415, 64
    %v531 = vpop.permute.xlu0 %530
    %v533 = vsel %vm417, %v528, 0
    %v536 = vsel %vm417, %v531, 0
    %538 = vmatprep.subr.bf16.mxu0 0
    %539 = vmatpush1.bf16.xpose.msra.mxu0 0
    %540 = vmatprep.subr.bf16.mxu0 0
    %541 = vmatpush1.bf16.xpose.msra.mxu0 0
    %542 = vmatprep.subr.bf16.mxu0 0
    %543 = vmatpush1.bf16.xpose.msra.mxu0 0
    %544 = vmatprep.subr.bf16.mxu0 0
    %545 = vmatpush1.bf16.xpose.msra.mxu0 0
    %546 = vmatprep.subr.bf16.mxu0 0
    %547 = vmatpush1.bf16.xpose.msra.mxu0 0
    %548 = vmatprep.subr.bf16.mxu0 0
    %549 = vmatpush1.bf16.xpose.msra.mxu0 0
    %550 = vmatprep.subr.bf16.mxu0 0
    %551 = vmatpush1.bf16.xpose.msra.mxu0 0
    %552 = vmatprep.subr.bf16.mxu0 0
    %553 = vmatpush1.bf16.xpose.msra.mxu0 %v536
    %554 = vmatprep.subr.bf16.mxu0 0
    %555 = vmatpush2.bf16.xpose.msra.mxu0 0
    %556 = vmatprep.subr.bf16.mxu0 0
    %557 = vmatpush2.bf16.xpose.msra.mxu0 0
    %558 = vmatprep.subr.bf16.mxu0 0
    %559 = vmatpush2.bf16.xpose.msra.mxu0 0
    %560 = vmatprep.subr.bf16.mxu0 0
    %561 = vmatpush2.bf16.xpose.msra.mxu0 0
    %562 = vmatprep.subr.bf16.mxu0 0
    %563 = vmatpush2.bf16.xpose.msra.mxu0 0
    %564 = vmatprep.subr.bf16.mxu0 0
    %565 = vmatpush2.bf16.xpose.msra.mxu0 0
    %566 = vmatprep.subr.bf16.mxu0 0
    %567 = vmatpush2.bf16.xpose.msra.mxu0 0
    %568 = vmatprep.subr.bf16.mxu0 0
    %569 = vmatpush2.bf16.xpose.msra.mxu0 0
    %570 = vmatprep.mubr.bf16.mxu0 0
    %571 = vmatmul.mubr.bf16.gmra.mxu0 %v533
    %v572 = vpop.f32.mrf.mxu0
    %v573 = vadd.f32 0.0, %v572
    %v574 = vpop.f32.mrf.mxu0
    %v575 = vpop.f32.mrf.mxu0
    %v576 = vpop.f32.mrf.mxu0
    %577 = vdwg.mxu0
    %v578 = vmul.f32 %v573, 0.125
    %v579 = vsel %vm465, %v578, -inf
    %580 = vmax.xlane.f32.xlu0 %v579
    %v581 = vpop.xlane.xlu0 %580
    %v582 = vsub.f32 %v578, %v581
    %v583 = vmul.f32 %v582, 1.442695
    %v584 = vpow.pop %v583
    %v585 = vsel %vm465, %v584, 0.0
    %586 = vadd.xlane.f32.xlu0 %v585
    %v587 = vpop.xlane.xlu0 %586
    %v588 = vrcp.pop %v587
    %v589 = vmul.f32 %v584, %v588
    %v590 = vpack.c.bf16 %v589, %v589
    %592 = vrot.lane.b32.xlu0 %v416, 64
    %v593 = vpop.permute.xlu0 %592
    %v595 = vsel %vm465, %v590, 0
    %v598 = vsel %vm481, %v593, 0
    %600 = vmatprep.subr.bf16.mxu0 0
    %601 = vmatpush1.bf16.msra.mxu0 0
    %602 = vmatprep.subr.bf16.mxu0 0
    %603 = vmatpush1.bf16.msra.mxu0 0
    %604 = vmatprep.subr.bf16.mxu0 0
    %605 = vmatpush1.bf16.msra.mxu0 0
    %606 = vmatprep.subr.bf16.mxu0 0
    %607 = vmatpush1.bf16.msra.mxu0 0
    %608 = vmatprep.subr.bf16.mxu0 0
    %609 = vmatpush1.bf16.msra.mxu0 0
    %610 = vmatprep.subr.bf16.mxu0 0
    %611 = vmatpush1.bf16.msra.mxu0 0
    %612 = vmatprep.subr.bf16.mxu0 0
    %613 = vmatpush1.bf16.msra.mxu0 0
    %614 = vmatprep.subr.bf16.mxu0 0
    %615 = vmatpush1.bf16.msra.mxu0 %v598
    %616 = vmatprep.subr.bf16.mxu0 0
    %617 = vmatpush2.bf16.msra.mxu0 0
    %618 = vmatprep.subr.bf16.mxu0 0
    %619 = vmatpush2.bf16.msra.mxu0 0
    %620 = vmatprep.subr.bf16.mxu0 0
    %621 = vmatpush2.bf16.msra.mxu0 0
    %622 = vmatprep.subr.bf16.mxu0 0
    %623 = vmatpush2.bf16.msra.mxu0 0
    %624 = vmatprep.subr.bf16.mxu0 0
    %625 = vmatpush2.bf16.msra.mxu0 0
    %626 = vmatprep.subr.bf16.mxu0 0
    %627 = vmatpush2.bf16.msra.mxu0 0
    %628 = vmatprep.subr.bf16.mxu0 0
    %629 = vmatpush2.bf16.msra.mxu0 0
    %630 = vmatprep.subr.bf16.mxu0 0
    %631 = vmatpush2.bf16.msra.mxu0 0
    %632 = vmatprep.mubr.bf16.mxu0 0
    %633 = vmatmul.mubr.bf16.gmra.mxu0 %v595
    %v634 = vpop.f32.mrf.mxu0
    %v635 = vadd.f32 0.0, %v634
    %v636 = vpop.f32.mrf.mxu0
    %v637 = vpop.f32.mrf.mxu0
    %v638 = vpop.f32.mrf.mxu0
    %639 = vdwg.mxu0
    %v640 = vpack.c.bf16 %v635, %v635
    %v649 = vunpack.c.l.b16 %v406
    %v650 = vunpack.c.l.b16 %v407
    %v651 = vunpack.c.l.b16 %v408
    %v652 = vunpack.c.l.b16 %v409
    %v653 = vunpack.c.l.b16 %v410
    %v654 = vunpack.c.l.b16 %v411
    %v655 = vunpack.c.l.b16 %v412
    %v656 = vunpack.c.l.b16 %v413
    %v657 = vpack.c.b16 %v650, %v649
    %v658 = vpack.c.b16 %v652, %v651
    %v659 = vpack.c.b16 %v654, %v653
    %v660 = vpack.c.b16 %v656, %v655
    %v666 = vsel %vm417, %v640, 0
    %668 = vmatprep.subr.bf16.mxu0 0
    %669 = vmatpush1.bf16.msra.mxu0 0
    %670 = vmatprep.subr.bf16.mxu0 0
    %671 = vmatpush1.bf16.msra.mxu0 0
    %672 = vmatprep.subr.bf16.mxu0 0
    %673 = vmatpush1.bf16.msra.mxu0 0
    %674 = vmatprep.subr.bf16.mxu0 0
    %675 = vmatpush1.bf16.msra.mxu0 0
    %676 = vmatprep.subr.bf16.mxu0 0
    %677 = vmatpush1.bf16.msra.mxu0 %v660
    %678 = vmatprep.subr.bf16.mxu0 0
    %679 = vmatpush1.bf16.msra.mxu0 %v659
    %680 = vmatprep.subr.bf16.mxu0 0
    %681 = vmatpush1.bf16.msra.mxu0 %v658
    %682 = vmatprep.subr.bf16.mxu0 0
    %683 = vmatpush1.bf16.msra.mxu0 %v657
    %684 = vmatprep.subr.bf16.mxu0 0
    %685 = vmatpush2.bf16.msra.mxu0 0
    %686 = vmatprep.subr.bf16.mxu0 0
    %687 = vmatpush2.bf16.msra.mxu0 0
    %688 = vmatprep.subr.bf16.mxu0 0
    %689 = vmatpush2.bf16.msra.mxu0 0
    %690 = vmatprep.subr.bf16.mxu0 0
    %691 = vmatpush2.bf16.msra.mxu0 0
    %692 = vmatprep.subr.bf16.mxu0 0
    %693 = vmatpush2.bf16.msra.mxu0 0
    %694 = vmatprep.subr.bf16.mxu0 0
    %695 = vmatpush2.bf16.msra.mxu0 0
    %696 = vmatprep.subr.bf16.mxu0 0
    %697 = vmatpush2.bf16.msra.mxu0 0
    %698 = vmatprep.subr.bf16.mxu0 0
    %699 = vmatpush2.bf16.msra.mxu0 0
    %700 = vmatprep.mubr.bf16.mxu0 0
    %701 = vmatmul.mubr.bf16.gmra.mxu0 %v666
    %v702 = vpop.f32.mrf.mxu0
    %v703 = vadd.f32 0.0, %v702
    %v704 = vpop.f32.mrf.mxu0
    %v705 = vpop.f32.mrf.mxu0
    %v706 = vpop.f32.mrf.mxu0
    %707 = vdwg.mxu0
    %v716 = vunpack.c.l.b16 %v398
    %v717 = vunpack.c.l.b16 %v399
    %v718 = vunpack.c.l.b16 %v400
    %v719 = vunpack.c.l.b16 %v401
    %v720 = vunpack.c.l.b16 %v402
    %v721 = vunpack.c.l.b16 %v403
    %v722 = vunpack.c.l.b16 %v404
    %v723 = vunpack.c.l.b16 %v405
    %v724 = vpack.c.b16 %v717, %v716
    %v725 = vpack.c.b16 %v719, %v718
    %v726 = vpack.c.b16 %v721, %v720
    %v727 = vpack.c.b16 %v723, %v722
    %v733 = vsel %vm417, %v525, 0
    %735 = vmatprep.subr.bf16.mxu0 0
    %736 = vmatpush1.bf16.msra.mxu0 0
    %737 = vmatprep.subr.bf16.mxu0 0
    %738 = vmatpush1.bf16.msra.mxu0 0
    %739 = vmatprep.subr.bf16.mxu0 0
    %740 = vmatpush1.bf16.msra.mxu0 0
    %741 = vmatprep.subr.bf16.mxu0 0
    %742 = vmatpush1.bf16.msra.mxu0 0
    %743 = vmatprep.subr.bf16.mxu0 0
    %744 = vmatpush1.bf16.msra.mxu0 %v727
    %745 = vmatprep.subr.bf16.mxu0 0
    %746 = vmatpush1.bf16.msra.mxu0 %v726
    %747 = vmatprep.subr.bf16.mxu0 0
    %748 = vmatpush1.bf16.msra.mxu0 %v725
    %749 = vmatprep.subr.bf16.mxu0 0
    %750 = vmatpush1.bf16.msra.mxu0 %v724
    %751 = vmatprep.subr.bf16.mxu0 0
    %752 = vmatpush2.bf16.msra.mxu0 0
    %753 = vmatprep.subr.bf16.mxu0 0
    %754 = vmatpush2.bf16.msra.mxu0 0
    %755 = vmatprep.subr.bf16.mxu0 0
    %756 = vmatpush2.bf16.msra.mxu0 0
    %757 = vmatprep.subr.bf16.mxu0 0
    %758 = vmatpush2.bf16.msra.mxu0 0
    %759 = vmatprep.subr.bf16.mxu0 0
    %760 = vmatpush2.bf16.msra.mxu0 0
    %761 = vmatprep.subr.bf16.mxu0 0
    %762 = vmatpush2.bf16.msra.mxu0 0
    %763 = vmatprep.subr.bf16.mxu0 0
    %764 = vmatpush2.bf16.msra.mxu0 0
    %765 = vmatprep.subr.bf16.mxu0 0
    %766 = vmatpush2.bf16.msra.mxu0 0
    %767 = vmatprep.mubr.bf16.mxu0 0
    %768 = vmatmul.mubr.bf16.gmra.mxu0 %v733
    %v769 = vpop.f32.mrf.mxu0
    %v770 = vadd.f32 %v703, %v769
    %v771 = vpop.f32.mrf.mxu0
    %v772 = vpop.f32.mrf.mxu0
    %v773 = vpop.f32.mrf.mxu0
    %774 = vdwg.mxu0
    %v775 = vpack.c.bf16 %v353, %v353
    %v776 = vpack.c.bf16 %v355, %v355
    %v777 = vpack.c.bf16 %v395, %v395
    %v779 = vsel %vm417, %v775, 0
    %v782 = vsel %vm417, %v776, 0
    %784 = vmatprep.subr.bf16.mxu0 0
    %785 = vmatpush1.bf16.xpose.msra.mxu0 0
    %786 = vmatprep.subr.bf16.mxu0 0
    %787 = vmatpush1.bf16.xpose.msra.mxu0 0
    %788 = vmatprep.subr.bf16.mxu0 0
    %789 = vmatpush1.bf16.xpose.msra.mxu0 0
    %790 = vmatprep.subr.bf16.mxu0 0
    %791 = vmatpush1.bf16.xpose.msra.mxu0 0
    %792 = vmatprep.subr.bf16.mxu0 0
    %793 = vmatpush1.bf16.xpose.msra.mxu0 0
    %794 = vmatprep.subr.bf16.mxu0 0
    %795 = vmatpush1.bf16.xpose.msra.mxu0 0
    %796 = vmatprep.subr.bf16.mxu0 0
    %797 = vmatpush1.bf16.xpose.msra.mxu0 0
    %798 = vmatprep.subr.bf16.mxu0 0
    %799 = vmatpush1.bf16.xpose.msra.mxu0 %v782
    %800 = vmatprep.subr.bf16.mxu0 0
    %801 = vmatpush2.bf16.xpose.msra.mxu0 0
    %802 = vmatprep.subr.bf16.mxu0 0
    %803 = vmatpush2.bf16.xpose.msra.mxu0 0
    %804 = vmatprep.subr.bf16.mxu0 0
    %805 = vmatpush2.bf16.xpose.msra.mxu0 0
    %806 = vmatprep.subr.bf16.mxu0 0
    %807 = vmatpush2.bf16.xpose.msra.mxu0 0
    %808 = vmatprep.subr.bf16.mxu0 0
    %809 = vmatpush2.bf16.xpose.msra.mxu0 0
    %810 = vmatprep.subr.bf16.mxu0 0
    %811 = vmatpush2.bf16.xpose.msra.mxu0 0
    %812 = vmatprep.subr.bf16.mxu0 0
    %813 = vmatpush2.bf16.xpose.msra.mxu0 0
    %814 = vmatprep.subr.bf16.mxu0 0
    %815 = vmatpush2.bf16.xpose.msra.mxu0 0
    %816 = vmatprep.mubr.bf16.mxu0 0
    %817 = vmatmul.mubr.bf16.gmra.mxu0 %v779
    %v818 = vpop.f32.mrf.mxu0
    %v819 = vadd.f32 0.0, %v818
    %v820 = vpop.f32.mrf.mxu0
    %v821 = vpop.f32.mrf.mxu0
    %v822 = vpop.f32.mrf.mxu0
    %823 = vdwg.mxu0
    %v824 = vmul.f32 %v819, 0.125
    %v825 = vsel %vm465, %v824, -inf
    %826 = vmax.xlane.f32.xlu0 %v825
    %v827 = vpop.xlane.xlu0 %826
    %v828 = vsub.f32 %v824, %v827
    %v829 = vmul.f32 %v828, 1.442695
    %v830 = vpow.pop %v829
    %v831 = vsel %vm465, %v830, 0.0
    %832 = vadd.xlane.f32.xlu0 %v831
    %v833 = vpop.xlane.xlu0 %832
    %v834 = vrcp.pop %v833
    %v835 = vmul.f32 %v830, %v834
    %v836 = vpack.c.bf16 %v835, %v835
    %v838 = vsel %vm465, %v836, 0
    %v841 = vsel %vm481, %v777, 0
    %843 = vmatprep.subr.bf16.mxu0 0
    %844 = vmatpush1.bf16.msra.mxu0 0
    %845 = vmatprep.subr.bf16.mxu0 0
    %846 = vmatpush1.bf16.msra.mxu0 0
    %847 = vmatprep.subr.bf16.mxu0 0
    %848 = vmatpush1.bf16.msra.mxu0 0
    %849 = vmatprep.subr.bf16.mxu0 0
    %850 = vmatpush1.bf16.msra.mxu0 0
    %851 = vmatprep.subr.bf16.mxu0 0
    %852 = vmatpush1.bf16.msra.mxu0 0
    %853 = vmatprep.subr.bf16.mxu0 0
    %854 = vmatpush1.bf16.msra.mxu0 0
    %855 = vmatprep.subr.bf16.mxu0 0
    %856 = vmatpush1.bf16.msra.mxu0 0
    %857 = vmatprep.subr.bf16.mxu0 0
    %858 = vmatpush1.bf16.msra.mxu0 %v841
    %859 = vmatprep.subr.bf16.mxu0 0
    %860 = vmatpush2.bf16.msra.mxu0 0
    %861 = vmatprep.subr.bf16.mxu0 0
    %862 = vmatpush2.bf16.msra.mxu0 0
    %863 = vmatprep.subr.bf16.mxu0 0
    %864 = vmatpush2.bf16.msra.mxu0 0
    %865 = vmatprep.subr.bf16.mxu0 0
    %866 = vmatpush2.bf16.msra.mxu0 0
    %867 = vmatprep.subr.bf16.mxu0 0
    %868 = vmatpush2.bf16.msra.mxu0 0
    %869 = vmatprep.subr.bf16.mxu0 0
    %870 = vmatpush2.bf16.msra.mxu0 0
    %871 = vmatprep.subr.bf16.mxu0 0
    %872 = vmatpush2.bf16.msra.mxu0 0
    %873 = vmatprep.subr.bf16.mxu0 0
    %874 = vmatpush2.bf16.msra.mxu0 0
    %875 = vmatprep.mubr.bf16.mxu0 0
    %876 = vmatmul.mubr.bf16.gmra.mxu0 %v838
    %v877 = vpop.f32.mrf.mxu0
    %v878 = vadd.f32 0.0, %v877
    %v879 = vpop.f32.mrf.mxu0
    %v880 = vpop.f32.mrf.mxu0
    %v881 = vpop.f32.mrf.mxu0
    %882 = vdwg.mxu0
    %v883 = vpack.c.bf16 %v878, %v878
    %885 = vrot.lane.b32.xlu0 %v775, 64
    %v886 = vpop.permute.xlu0 %885
    %888 = vrot.lane.b32.xlu0 %v776, 64
    %v889 = vpop.permute.xlu0 %888
    %v891 = vsel %vm417, %v886, 0
    %v894 = vsel %vm417, %v889, 0
    %896 = vmatprep.subr.bf16.mxu0 0
    %897 = vmatpush1.bf16.xpose.msra.mxu0 0
    %898 = vmatprep.subr.bf16.mxu0 0
    %899 = vmatpush1.bf16.xpose.msra.mxu0 0
    %900 = vmatprep.subr.bf16.mxu0 0
    %901 = vmatpush1.bf16.xpose.msra.mxu0 0
    %902 = vmatprep.subr.bf16.mxu0 0
    %903 = vmatpush1.bf16.xpose.msra.mxu0 0
    %904 = vmatprep.subr.bf16.mxu0 0
    %905 = vmatpush1.bf16.xpose.msra.mxu0 0
    %906 = vmatprep.subr.bf16.mxu0 0
    %907 = vmatpush1.bf16.xpose.msra.mxu0 0
    %908 = vmatprep.subr.bf16.mxu0 0
    %909 = vmatpush1.bf16.xpose.msra.mxu0 0
    %910 = vmatprep.subr.bf16.mxu0 0
    %911 = vmatpush1.bf16.xpose.msra.mxu0 %v894
    %912 = vmatprep.subr.bf16.mxu0 0
    %913 = vmatpush2.bf16.xpose.msra.mxu0 0
    %914 = vmatprep.subr.bf16.mxu0 0
    %915 = vmatpush2.bf16.xpose.msra.mxu0 0
    %916 = vmatprep.subr.bf16.mxu0 0
    %917 = vmatpush2.bf16.xpose.msra.mxu0 0
    %918 = vmatprep.subr.bf16.mxu0 0
    %919 = vmatpush2.bf16.xpose.msra.mxu0 0
    %920 = vmatprep.subr.bf16.mxu0 0
    %921 = vmatpush2.bf16.xpose.msra.mxu0 0
    %922 = vmatprep.subr.bf16.mxu0 0
    %923 = vmatpush2.bf16.xpose.msra.mxu0 0
    %924 = vmatprep.subr.bf16.mxu0 0
    %925 = vmatpush2.bf16.xpose.msra.mxu0 0
    %926 = vmatprep.subr.bf16.mxu0 0
    %927 = vmatpush2.bf16.xpose.msra.mxu0 0
    %928 = vmatprep.mubr.bf16.mxu0 0
    %929 = vmatmul.mubr.bf16.gmra.mxu0 %v891
    %v930 = vpop.f32.mrf.mxu0
    %v931 = vadd.f32 0.0, %v930
    %v932 = vpop.f32.mrf.mxu0
    %v933 = vpop.f32.mrf.mxu0
    %v934 = vpop.f32.mrf.mxu0
    %935 = vdwg.mxu0
    %v936 = vmul.f32 %v931, 0.125
    %v937 = vsel %vm465, %v936, -inf
    %938 = vmax.xlane.f32.xlu0 %v937
    %v939 = vpop.xlane.xlu0 %938
    %v940 = vsub.f32 %v936, %v939
    %v941 = vmul.f32 %v940, 1.442695
    %v942 = vpow.pop %v941
    %v943 = vsel %vm465, %v942, 0.0
    %944 = vadd.xlane.f32.xlu0 %v943
    %v945 = vpop.xlane.xlu0 %944
    %v946 = vrcp.pop %v945
    %v947 = vmul.f32 %v942, %v946
    %v948 = vpack.c.bf16 %v947, %v947
    %950 = vrot.lane.b32.xlu0 %v777, 64
    %v951 = vpop.permute.xlu0 %950
    %v953 = vsel %vm465, %v948, 0
    %v956 = vsel %vm481, %v951, 0
    %958 = vmatprep.subr.bf16.mxu0 0
    %959 = vmatpush1.bf16.msra.mxu0 0
    %960 = vmatprep.subr.bf16.mxu0 0
    %961 = vmatpush1.bf16.msra.mxu0 0
    %962 = vmatprep.subr.bf16.mxu0 0
    %963 = vmatpush1.bf16.msra.mxu0 0
    %964 = vmatprep.subr.bf16.mxu0 0
    %965 = vmatpush1.bf16.msra.mxu0 0
    %966 = vmatprep.subr.bf16.mxu0 0
    %967 = vmatpush1.bf16.msra.mxu0 0
    %968 = vmatprep.subr.bf16.mxu0 0
    %969 = vmatpush1.bf16.msra.mxu0 0
    %970 = vmatprep.subr.bf16.mxu0 0
    %971 = vmatpush1.bf16.msra.mxu0 0
    %972 = vmatprep.subr.bf16.mxu0 0
    %973 = vmatpush1.bf16.msra.mxu0 %v956
    %974 = vmatprep.subr.bf16.mxu0 0
    %975 = vmatpush2.bf16.msra.mxu0 0
    %976 = vmatprep.subr.bf16.mxu0 0
    %977 = vmatpush2.bf16.msra.mxu0 0
    %978 = vmatprep.subr.bf16.mxu0 0
    %979 = vmatpush2.bf16.msra.mxu0 0
    %980 = vmatprep.subr.bf16.mxu0 0
    %981 = vmatpush2.bf16.msra.mxu0 0
    %982 = vmatprep.subr.bf16.mxu0 0
    %983 = vmatpush2.bf16.msra.mxu0 0
    %984 = vmatprep.subr.bf16.mxu0 0
    %985 = vmatpush2.bf16.msra.mxu0 0
    %986 = vmatprep.subr.bf16.mxu0 0
    %987 = vmatpush2.bf16.msra.mxu0 0
    %988 = vmatprep.subr.bf16.mxu0 0
    %989 = vmatpush2.bf16.msra.mxu0 0
    %990 = vmatprep.mubr.bf16.mxu0 0
    %991 = vmatmul.mubr.bf16.gmra.mxu0 %v953
    %v992 = vpop.f32.mrf.mxu0
    %v993 = vadd.f32 0.0, %v992
    %v994 = vpop.f32.mrf.mxu0
    %v995 = vpop.f32.mrf.mxu0
    %v996 = vpop.f32.mrf.mxu0
    %997 = vdwg.mxu0
    %v998 = vpack.c.bf16 %v993, %v993
    %v1000 = vsel %vm417, %v998, 0
    %1002 = vmatprep.subr.bf16.mxu0 0
    %1003 = vmatpush1.bf16.msra.mxu0 0
    %1004 = vmatprep.subr.bf16.mxu0 0
    %1005 = vmatpush1.bf16.msra.mxu0 0
    %1006 = vmatprep.subr.bf16.mxu0 0
    %1007 = vmatpush1.bf16.msra.mxu0 0
    %1008 = vmatprep.subr.bf16.mxu0 0
    %1009 = vmatpush1.bf16.msra.mxu0 0
    %1010 = vmatprep.subr.bf16.mxu0 0
    %1011 = vmatpush1.bf16.msra.mxu0 %v660
    %1012 = vmatprep.subr.bf16.mxu0 0
    %1013 = vmatpush1.bf16.msra.mxu0 %v659
    %1014 = vmatprep.subr.bf16.mxu0 0
    %1015 = vmatpush1.bf16.msra.mxu0 %v658
    %1016 = vmatprep.subr.bf16.mxu0 0
    %1017 = vmatpush1.bf16.msra.mxu0 %v657
    %1018 = vmatprep.subr.bf16.mxu0 0
    %1019 = vmatpush2.bf16.msra.mxu0 0
    %1020 = vmatprep.subr.bf16.mxu0 0
    %1021 = vmatpush2.bf16.msra.mxu0 0
    %1022 = vmatprep.subr.bf16.mxu0 0
    %1023 = vmatpush2.bf16.msra.mxu0 0
    %1024 = vmatprep.subr.bf16.mxu0 0
    %1025 = vmatpush2.bf16.msra.mxu0 0
    %1026 = vmatprep.subr.bf16.mxu0 0
    %1027 = vmatpush2.bf16.msra.mxu0 0
    %1028 = vmatprep.subr.bf16.mxu0 0
    %1029 = vmatpush2.bf16.msra.mxu0 0
    %1030 = vmatprep.subr.bf16.mxu0 0
    %1031 = vmatpush2.bf16.msra.mxu0 0
    %1032 = vmatprep.subr.bf16.mxu0 0
    %1033 = vmatpush2.bf16.msra.mxu0 0
    %1034 = vmatprep.mubr.bf16.mxu0 0
    %1035 = vmatmul.mubr.bf16.gmra.mxu0 %v1000
    %v1036 = vpop.f32.mrf.mxu0
    %v1037 = vadd.f32 0.0, %v1036
    %v1038 = vpop.f32.mrf.mxu0
    %v1039 = vpop.f32.mrf.mxu0
    %v1040 = vpop.f32.mrf.mxu0
    %1041 = vdwg.mxu0
    %v1043 = vsel %vm417, %v883, 0
    %1045 = vmatprep.subr.bf16.mxu0 0
    %1046 = vmatpush1.bf16.msra.mxu0 0
    %1047 = vmatprep.subr.bf16.mxu0 0
    %1048 = vmatpush1.bf16.msra.mxu0 0
    %1049 = vmatprep.subr.bf16.mxu0 0
    %1050 = vmatpush1.bf16.msra.mxu0 0
    %1051 = vmatprep.subr.bf16.mxu0 0
    %1052 = vmatpush1.bf16.msra.mxu0 0
    %1053 = vmatprep.subr.bf16.mxu0 0
    %1054 = vmatpush1.bf16.msra.mxu0 %v727
    %1055 = vmatprep.subr.bf16.mxu0 0
    %1056 = vmatpush1.bf16.msra.mxu0 %v726
    %1057 = vmatprep.subr.bf16.mxu0 0
    %1058 = vmatpush1.bf16.msra.mxu0 %v725
    %1059 = vmatprep.subr.bf16.mxu0 0
    %1060 = vmatpush1.bf16.msra.mxu0 %v724
    %1061 = vmatprep.subr.bf16.mxu0 0
    %1062 = vmatpush2.bf16.msra.mxu0 0
    %1063 = vmatprep.subr.bf16.mxu0 0
    %1064 = vmatpush2.bf16.msra.mxu0 0
    %1065 = vmatprep.subr.bf16.mxu0 0
    %1066 = vmatpush2.bf16.msra.mxu0 0
    %1067 = vmatprep.subr.bf16.mxu0 0
    %1068 = vmatpush2.bf16.msra.mxu0 0
    %1069 = vmatprep.subr.bf16.mxu0 0
    %1070 = vmatpush2.bf16.msra.mxu0 0
    %1071 = vmatprep.subr.bf16.mxu0 0
    %1072 = vmatpush2.bf16.msra.mxu0 0
    %1073 = vmatprep.subr.bf16.mxu0 0
    %1074 = vmatpush2.bf16.msra.mxu0 0
    %1075 = vmatprep.subr.bf16.mxu0 0
    %1076 = vmatpush2.bf16.msra.mxu0 0
    %1077 = vmatprep.mubr.bf16.mxu0 0
    %1078 = vmatmul.mubr.bf16.gmra.mxu0 %v1043
    %v1079 = vpop.f32.mrf.mxu0
    %v1080 = vadd.f32 %v1037, %v1079
    %v1081 = vpop.f32.mrf.mxu0
    %v1082 = vpop.f32.mrf.mxu0
    %v1083 = vpop.f32.mrf.mxu0
    %1084 = vdwg.mxu0
    %v1085 = vld [vmem:[%s4] sm:$0x1]
    %v1087 = vlaneseq
    %v1088 = vshrl.u32 %v1087, 7
    %v1089 = vsub.s32 0, %v1088
    %v1090 = vrot.slane %v1085, %v1089
    %v1092 = vadd.f32 %v770, %v1090
    %v1093 = vadd.f32 %v1080, %v1090
    %v1094 = vadd.f32 %v134, %v1092
    %v1095 = vadd.f32 %v135, %v1093
    %1096 = vadd.xlane.f32.xlu0 %v1094
    %v1097 = vpop.xlane.xlu0 %1096
    %1098 = vadd.xlane.f32.xlu0 %v1095
    %v1099 = vpop.xlane.xlu0 %1098
    %v1100 = vrcp.pop 128.0
    %v1101 = vmul.f32 %v1097, %v1100
    %v1102 = vmul.f32 %v1099, %v1100
    %v1103 = vsub.f32 %v1094, %v1101
    %v1104 = vsub.f32 %v1095, %v1102
    %v1105 = vmul.f32 %v1103, %v1103
    %v1106 = vmul.f32 %v1104, %v1104
    %1107 = vadd.xlane.f32.xlu0 %v1105
    %v1108 = vpop.xlane.xlu0 %1107
    %1109 = vadd.xlane.f32.xlu0 %v1106
    %v1110 = vpop.xlane.xlu0 %1109
    %v1111 = vmul.f32 %v1108, %v1100
    %v1112 = vmul.f32 %v1110, %v1100
    %v1113 = vadd.f32 %v1111, 1e-05
    %v1114 = vadd.f32 %v1112, 1e-05
    %v1115 = vrsqrt.pop %v1113
    %v1116 = vrsqrt.pop %v1114
    %v1117 = vmul.f32 %v1103, %v1115
    %v1118 = vmul.f32 %v1104, %v1116
    %v1119 = vld [vmem:[%s5] sm:$0x1]
    %v1121 = vlaneseq
    %v1122 = vshrl.u32 %v1121, 7
    %v1123 = vsub.s32 0, %v1122
    %v1124 = vrot.slane %v1119, %v1123
    %v1126 = vmul.f32 %v1117, %v1124
    %v1127 = vmul.f32 %v1118, %v1124
    %v1128 = vld [vmem:[%s6] sm:$0x1]
    %v1130 = vlaneseq
    %v1131 = vshrl.u32 %v1130, 7
    %v1132 = vsub.s32 0, %v1131
    %v1133 = vrot.slane %v1128, %v1132
    %v1135 = vadd.f32 %v1126, %v1133
    %v1136 = vadd.f32 %v1127, %v1133
    %v1137 = vpack.c.bf16 %v1136, %v1135
    %v1138 = vld [vmem:[#allocation8] sm:$0xf]
    %v1139 = vld [vmem:[#allocation8 + $0x4] sm:$0xf]
    %v1140 = vld [vmem:[#allocation8 + $0x8] sm:$0xf]
    %v1141 = vld [vmem:[#allocation8 + $0xc] sm:$0xf]
    %v1142 = vld [vmem:[#allocation8 + $0x10] sm:$0xf]
    %v1143 = vld [vmem:[#allocation8 + $0x14] sm:$0xf]
    %v1144 = vld [vmem:[#allocation8 + $0x18] sm:$0xf]
    %v1145 = vld [vmem:[#allocation8 + $0x1c] sm:$0xf]
    %v1146 = vld [vmem:[#allocation8 + $0x20] sm:$0xf]
    %v1147 = vld [vmem:[#allocation8 + $0x24] sm:$0xf]
    %v1148 = vld [vmem:[#allocation8 + $0x28] sm:$0xf]
    %v1149 = vld [vmem:[#allocation8 + $0x2c] sm:$0xf]
    %v1150 = vld [vmem:[#allocation8 + $0x30] sm:$0xf]
    %v1151 = vld [vmem:[#allocation8 + $0x34] sm:$0xf]
    %v1152 = vld [vmem:[#allocation8 + $0x38] sm:$0xf]
    %v1153 = vld [vmem:[#allocation8 + $0x3c] sm:$0xf]
    %v1154 = vld [vmem:[%s8] sm:$0x1]
    %v1156 = vlaneseq
    %v1157 = vshrl.u32 %v1156, 7
    %v1158 = vsub.s32 0, %v1157
    %v1159 = vrot.slane %v1154, %v1158
    %v1177 = vunpack.c.l.b16 %v1138
    %v1178 = vunpack.c.l.b16 %v1139
    %v1179 = vunpack.c.l.b16 %v1140
    %v1180 = vunpack.c.l.b16 %v1141
    %v1181 = vunpack.c.l.b16 %v1142
    %v1182 = vunpack.c.l.b16 %v1143
    %v1183 = vunpack.c.l.b16 %v1144
    %v1184 = vunpack.c.l.b16 %v1145
    %v1185 = vunpack.c.l.b16 %v1146
    %v1186 = vunpack.c.l.b16 %v1147
    %v1187 = vunpack.c.l.b16 %v1148
    %v1188 = vunpack.c.l.b16 %v1149
    %v1189 = vunpack.c.l.b16 %v1150
    %v1190 = vunpack.c.l.b16 %v1151
    %v1191 = vunpack.c.l.b16 %v1152
    %v1192 = vunpack.c.l.b16 %v1153
    %v1193 = vpack.c.b16 %v1178, %v1177
    %v1194 = vpack.c.b16 %v1180, %v1179
    %v1195 = vpack.c.b16 %v1182, %v1181
    %v1196 = vpack.c.b16 %v1184, %v1183
    %v1197 = vpack.c.b16 %v1186, %v1185
    %v1198 = vpack.c.b16 %v1188, %v1187
    %v1199 = vpack.c.b16 %v1190, %v1189
    %v1200 = vpack.c.b16 %v1192, %v1191
    %1209 = vmatprep.subr.bf16.mxu0 0
    %1210 = vmatpush1.bf16.msra.mxu0 %v1200
    %1211 = vmatprep.subr.bf16.mxu0 0
    %1212 = vmatpush1.bf16.msra.mxu0 %v1199
    %1213 = vmatprep.subr.bf16.mxu0 0
    %1214 = vmatpush1.bf16.msra.mxu0 %v1198
    %1215 = vmatprep.subr.bf16.mxu0 0
    %1216 = vmatpush1.bf16.msra.mxu0 %v1197
    %1217 = vmatprep.subr.bf16.mxu0 0
    %1218 = vmatpush1.bf16.msra.mxu0 %v1196
    %1219 = vmatprep.subr.bf16.mxu0 0
    %1220 = vmatpush1.bf16.msra.mxu0 %v1195
    %1221 = vmatprep.subr.bf16.mxu0 0
    %1222 = vmatpush1.bf16.msra.mxu0 %v1194
    %1223 = vmatprep.subr.bf16.mxu0 0
    %1224 = vmatpush1.bf16.msra.mxu0 %v1193
    %1225 = vmatprep.subr.bf16.mxu0 0
    %1226 = vmatpush2.bf16.msra.mxu0 0
    %1227 = vmatprep.subr.bf16.mxu0 0
    %1228 = vmatpush2.bf16.msra.mxu0 0
    %1229 = vmatprep.subr.bf16.mxu0 0
    %1230 = vmatpush2.bf16.msra.mxu0 0
    %1231 = vmatprep.subr.bf16.mxu0 0
    %1232 = vmatpush2.bf16.msra.mxu0 0
    %1233 = vmatprep.subr.bf16.mxu0 0
    %1234 = vmatpush2.bf16.msra.mxu0 0
    %1235 = vmatprep.subr.bf16.mxu0 0
    %1236 = vmatpush2.bf16.msra.mxu0 0
    %1237 = vmatprep.subr.bf16.mxu0 0
    %1238 = vmatpush2.bf16.msra.mxu0 0
    %1239 = vmatprep.subr.bf16.mxu0 0
    %1240 = vmatpush2.bf16.msra.mxu0 0
    %1241 = vmatprep.mubr.bf16.mxu0 0
    %1242 = vmatmul.mubr.bf16.gmra.mxu0 %v1137
    %v1243 = vpop.f32.mrf.mxu0
    %v1244 = vadd.f32 %v1159, %v1243
    %v1245 = vpop.f32.mrf.mxu0
    %v1246 = vpop.f32.mrf.mxu0
    %v1247 = vadd.f32 %v1159, %v1246
    %v1248 = vpop.f32.mrf.mxu0
    %1249 = vdwg.mxu0
    %v1250 = vmax.f32 %v1244, 0.0
    %v1251 = vmax.f32 %v1247, 0.0
    %v1252 = vpack.c.bf16 %v1251, %v1250
    %v1253 = vld [vmem:[#allocation10] sm:$0xf]
    %v1254 = vld [vmem:[#allocation10 + $0x4] sm:$0xf]
    %v1255 = vld [vmem:[#allocation10 + $0x8] sm:$0xf]
    %v1256 = vld [vmem:[#allocation10 + $0xc] sm:$0xf]
    %v1257 = vld [vmem:[#allocation10 + $0x10] sm:$0xf]
    %v1258 = vld [vmem:[#allocation10 + $0x14] sm:$0xf]
    %v1259 = vld [vmem:[#allocation10 + $0x18] sm:$0xf]
    %v1260 = vld [vmem:[#allocation10 + $0x1c] sm:$0xf]
    %v1261 = vld [vmem:[#allocation10 + $0x20] sm:$0xf]
    %v1262 = vld [vmem:[#allocation10 + $0x24] sm:$0xf]
    %v1263 = vld [vmem:[#allocation10 + $0x28] sm:$0xf]
    %v1264 = vld [vmem:[#allocation10 + $0x2c] sm:$0xf]
    %v1265 = vld [vmem:[#allocation10 + $0x30] sm:$0xf]
    %v1266 = vld [vmem:[#allocation10 + $0x34] sm:$0xf]
    %v1267 = vld [vmem:[#allocation10 + $0x38] sm:$0xf]
    %v1268 = vld [vmem:[#allocation10 + $0x3c] sm:$0xf]
    %v1269 = vld [vmem:[%s10] sm:$0x1]
    %v1271 = vlaneseq
    %v1272 = vshrl.u32 %v1271, 7
    %v1273 = vsub.s32 0, %v1272
    %v1274 = vrot.slane %v1269, %v1273
    %v1292 = vunpack.c.l.b16 %v1253
    %v1293 = vunpack.c.l.b16 %v1254
    %v1294 = vunpack.c.l.b16 %v1255
    %v1295 = vunpack.c.l.b16 %v1256
    %v1296 = vunpack.c.l.b16 %v1257
    %v1297 = vunpack.c.l.b16 %v1258
    %v1298 = vunpack.c.l.b16 %v1259
    %v1299 = vunpack.c.l.b16 %v1260
    %v1300 = vunpack.c.l.b16 %v1261
    %v1301 = vunpack.c.l.b16 %v1262
    %v1302 = vunpack.c.l.b16 %v1263
    %v1303 = vunpack.c.l.b16 %v1264
    %v1304 = vunpack.c.l.b16 %v1265
    %v1305 = vunpack.c.l.b16 %v1266
    %v1306 = vunpack.c.l.b16 %v1267
    %v1307 = vunpack.c.l.b16 %v1268
    %v1308 = vpack.c.b16 %v1293, %v1292
    %v1309 = vpack.c.b16 %v1295, %v1294
    %v1310 = vpack.c.b16 %v1297, %v1296
    %v1311 = vpack.c.b16 %v1299, %v1298
    %v1312 = vpack.c.b16 %v1301, %v1300
    %v1313 = vpack.c.b16 %v1303, %v1302
    %v1314 = vpack.c.b16 %v1305, %v1304
    %v1315 = vpack.c.b16 %v1307, %v1306
    %1324 = vmatprep.subr.bf16.mxu0 0
    %1325 = vmatpush1.bf16.msra.mxu0 %v1315
    %1326 = vmatprep.subr.bf16.mxu0 0
    %1327 = vmatpush1.bf16.msra.mxu0 %v1314
    %1328 = vmatprep.subr.bf16.mxu0 0
    %1329 = vmatpush1.bf16.msra.mxu0 %v1313
    %1330 = vmatprep.subr.bf16.mxu0 0
    %1331 = vmatpush1.bf16.msra.mxu0 %v1312
    %1332 = vmatprep.subr.bf16.mxu0 0
    %1333 = vmatpush1.bf16.msra.mxu0 %v1311
    %1334 = vmatprep.subr.bf16.mxu0 0
    %1335 = vmatpush1.bf16.msra.mxu0 %v1310
    %1336 = vmatprep.subr.bf16.mxu0 0
    %1337 = vmatpush1.bf16.msra.mxu0 %v1309
    %1338 = vmatprep.subr.bf16.mxu0 0
    %1339 = vmatpush1.bf16.msra.mxu0 %v1308
    %1340 = vmatprep.subr.bf16.mxu0 0
    %1341 = vmatpush2.bf16.msra.mxu0 0
    %1342 = vmatprep.subr.bf16.mxu0 0
    %1343 = vmatpush2.bf16.msra.mxu0 0
    %1344 = vmatprep.subr.bf16.mxu0 0
    %1345 = vmatpush2.bf16.msra.mxu0 0
    %1346 = vmatprep.subr.bf16.mxu0 0
    %1347 = vmatpush2.bf16.msra.mxu0 0
    %1348 = vmatprep.subr.bf16.mxu0 0
    %1349 = vmatpush2.bf16.msra.mxu0 0
    %1350 = vmatprep.subr.bf16.mxu0 0
    %1351 = vmatpush2.bf16.msra.mxu0 0
    %1352 = vmatprep.subr.bf16.mxu0 0
    %1353 = vmatpush2.bf16.msra.mxu0 0
    %1354 = vmatprep.subr.bf16.mxu0 0
    %1355 = vmatpush2.bf16.msra.mxu0 0
    %1356 = vmatprep.mubr.bf16.mxu0 0
    %1357 = vmatmul.mubr.bf16.gmra.mxu0 %v1252
    %v1358 = vpop.f32.mrf.mxu0
    %v1359 = vadd.f32 %v1274, %v1358
    %v1360 = vpop.f32.mrf.mxu0
    %v1361 = vpop.f32.mrf.mxu0
    %v1362 = vadd.f32 %v1274, %v1361
    %v1363 = vpop.f32.mrf.mxu0
    %1364 = vdwg.mxu0
    %v1365 = vadd.f32 %v1135, %v1359
    %v1366 = vadd.f32 %v1136, %v1362
    %1367 = vadd.xlane.f32.xlu0 %v1365
    %v1368 = vpop.xlane.xlu0 %1367
    %1369 = vadd.xlane.f32.xlu0 %v1366
    %v1370 = vpop.xlane.xlu0 %1369
    %v1371 = vmul.f32 %v1368, %v1100
    %v1372 = vmul.f32 %v1370, %v1100
    %v1373 = vsub.f32 %v1365, %v1371
    %v1374 = vsub.f32 %v1366, %v1372
    %v1375 = vmul.f32 %v1373, %v1373
    %v1376 = vmul.f32 %v1374, %v1374
    %1377 = vadd.xlane.f32.xlu0 %v1375
    %v1378 = vpop.xlane.xlu0 %1377
    %1379 = vadd.xlane.f32.xlu0 %v1376
    %v1380 = vpop.xlane.xlu0 %1379
    %v1381 = vmul.f32 %v1378, %v1100
    %v1382 = vmul.f32 %v1380, %v1100
    %v1383 = vadd.f32 %v1381, 1e-05
    %v1384 = vadd.f32 %v1382, 1e-05
    %v1385 = vrsqrt.pop %v1383
    %v1386 = vrsqrt.pop %v1384
    %v1387 = vmul.f32 %v1373, %v1385
    %v1388 = vmul.f32 %v1374, %v1386
    %v1389 = vld [vmem:[%s11] sm:$0x1]
    %v1391 = vlaneseq
    %v1392 = vshrl.u32 %v1391, 7
    %v1393 = vsub.s32 0, %v1392
    %v1394 = vrot.slane %v1389, %v1393
    %v1396 = vmul.f32 %v1387, %v1394
    %v1397 = vmul.f32 %v1388, %v1394
    %v1398 = vld [vmem:[%s12] sm:$0x1]
    %v1400 = vlaneseq
    %v1401 = vshrl.u32 %v1400, 7
    %v1402 = vsub.s32 0, %v1401
    %v1403 = vrot.slane %v1398, %v1402
    %v1405 = vadd.f32 %v1396, %v1403
    %v1406 = vadd.f32 %v1397, %v1403
    %v1407 = vpack.c.bf16 %v1406, %v1405
    %v1408 = vld [vmem:[#allocation11] sm:$0xf]
    %v1409 = vld [vmem:[#allocation11 + $0x4] sm:$0xf]
    %v1410 = vld [vmem:[#allocation11 + $0x8] sm:$0xf]
    %v1411 = vld [vmem:[#allocation11 + $0xc] sm:$0xf]
    %v1412 = vld [vmem:[#allocation11 + $0x10] sm:$0xf]
    %v1413 = vld [vmem:[#allocation11 + $0x14] sm:$0xf]
    %v1414 = vld [vmem:[#allocation11 + $0x18] sm:$0xf]
    %v1415 = vld [vmem:[#allocation11 + $0x1c] sm:$0xf]
    %v1416 = vld [vmem:[#allocation11 + $0x20] sm:$0xf]
    %v1417 = vld [vmem:[#allocation11 + $0x24] sm:$0xf]
    %v1418 = vld [vmem:[#allocation11 + $0x28] sm:$0xf]
    %v1419 = vld [vmem:[#allocation11 + $0x2c] sm:$0xf]
    %v1420 = vld [vmem:[#allocation11 + $0x30] sm:$0xf]
    %v1421 = vld [vmem:[#allocation11 + $0x34] sm:$0xf]
    %v1422 = vld [vmem:[#allocation11 + $0x38] sm:$0xf]
    %v1423 = vld [vmem:[#allocation11 + $0x3c] sm:$0xf]
    %v1424 = vld [vmem:[%s14] sm:$0x1]
    %v1426 = vlaneseq
    %v1427 = vshrl.u32 %v1426, 7
    %v1428 = vsub.s32 0, %v1427
    %v1429 = vrot.slane %v1424, %v1428
    %v1447 = vunpack.c.l.b16 %v1408
    %v1448 = vunpack.c.l.b16 %v1409
    %v1449 = vunpack.c.l.b16 %v1410
    %v1450 = vunpack.c.l.b16 %v1411
    %v1451 = vunpack.c.l.b16 %v1412
    %v1452 = vunpack.c.l.b16 %v1413
    %v1453 = vunpack.c.l.b16 %v1414
    %v1454 = vunpack.c.l.b16 %v1415
    %v1455 = vunpack.c.l.b16 %v1416
    %v1456 = vunpack.c.l.b16 %v1417
    %v1457 = vunpack.c.l.b16 %v1418
    %v1458 = vunpack.c.l.b16 %v1419
    %v1459 = vunpack.c.l.b16 %v1420
    %v1460 = vunpack.c.l.b16 %v1421
    %v1461 = vunpack.c.l.b16 %v1422
    %v1462 = vunpack.c.l.b16 %v1423
    %v1463 = vpack.c.b16 %v1448, %v1447
    %v1464 = vpack.c.b16 %v1450, %v1449
    %v1465 = vpack.c.b16 %v1452, %v1451
    %v1466 = vpack.c.b16 %v1454, %v1453
    %v1467 = vpack.c.b16 %v1456, %v1455
    %v1468 = vpack.c.b16 %v1458, %v1457
    %v1469 = vpack.c.b16 %v1460, %v1459
    %v1470 = vpack.c.b16 %v1462, %v1461
    %1479 = vmatprep.subr.bf16.mxu0 0
    %1480 = vmatpush1.bf16.msra.mxu0 %v1470
    %1481 = vmatprep.subr.bf16.mxu0 0
    %1482 = vmatpush1.bf16.msra.mxu0 %v1469
    %1483 = vmatprep.subr.bf16.mxu0 0
    %1484 = vmatpush1.bf16.msra.mxu0 %v1468
    %1485 = vmatprep.subr.bf16.mxu0 0
    %1486 = vmatpush1.bf16.msra.mxu0 %v1467
    %1487 = vmatprep.subr.bf16.mxu0 0
    %1488 = vmatpush1.bf16.msra.mxu0 %v1466
    %1489 = vmatprep.subr.bf16.mxu0 0
    %1490 = vmatpush1.bf16.msra.mxu0 %v1465
    %1491 = vmatprep.subr.bf16.mxu0 0
    %1492 = vmatpush1.bf16.msra.mxu0 %v1464
    %1493 = vmatprep.subr.bf16.mxu0 0
    %1494 = vmatpush1.bf16.msra.mxu0 %v1463
    %1495 = vmatprep.subr.bf16.mxu0 0
    %1496 = vmatpush2.bf16.msra.mxu0 0
    %1497 = vmatprep.subr.bf16.mxu0 0
    %1498 = vmatpush2.bf16.msra.mxu0 0
    %1499 = vmatprep.subr.bf16.mxu0 0
    %1500 = vmatpush2.bf16.msra.mxu0 0
    %1501 = vmatprep.subr.bf16.mxu0 0
    %1502 = vmatpush2.bf16.msra.mxu0 0
    %1503 = vmatprep.subr.bf16.mxu0 0
    %1504 = vmatpush2.bf16.msra.mxu0 0
    %1505 = vmatprep.subr.bf16.mxu0 0
    %1506 = vmatpush2.bf16.msra.mxu0 0
    %1507 = vmatprep.subr.bf16.mxu0 0
    %1508 = vmatpush2.bf16.msra.mxu0 0
    %1509 = vmatprep.subr.bf16.mxu0 0
    %1510 = vmatpush2.bf16.msra.mxu0 0
    %1511 = vmatprep.mubr.bf16.mxu0 0
    %1512 = vmatmul.mubr.bf16.gmra.mxu0 %v1407
    %v1513 = vpop.f32.mrf.mxu0
    %v1514 = vadd.f32 %v1429, %v1513
    %v1515 = vpop.f32.mrf.mxu0
    %v1516 = vpop.f32.mrf.mxu0
    %v1517 = vadd.f32 %v1429, %v1516
    %v1518 = vpop.f32.mrf.mxu0
    %1519 = vdwg.mxu0
    %1520 = vst [vmem:[#allocation13] sm:$0xff] %v1514
    %1521 = vst [vmem:[#allocation13 + $0x8] sm:$0xff] %v1517
    // Predicated region
    $region86: #{tpu_custom_call.1} parent=1 // pred_check
      _
    $region87: #{tpu_custom_call.1} parent=1 // pred_check_branch
      %1523 = sbr.rel (0) target = $region89
    $region88: #{tpu_custom_call.1} parent=1 // pred_region
      %s1525 = ssub.s32 256, 256
      %1526 = vsyncadd [#allocation4], %s1525
      %s1527 = sshll.u32 [#allocation13], 4
      %s1528 = int_to_ptr.vmem [resolvable:$true] %s1527
      %1533 = dma.vmem_to_hbm [thread:$0]  %s1528, 256, %s15, [#allocation4], 128, 128, 8
    $region89: #{tpu_custom_call.1} parent=1 // pred_fallthru
      _
    // Predicated region
    $region90: #{tpu_custom_call.1} parent=1 // pred_check
      _
    $region91: #{tpu_custom_call.1} parent=1 // pred_check_branch
      %1535 = sbr.rel (0) target = $region93
    $region92: #{tpu_custom_call.1} parent=1 // pred_region
      %1536 = dma.done [#allocation4], 256
    $region93: #{tpu_custom_call.1} parent=1 // pred_fallthru
      _
    %1537 = vsyncpa [#allocation3], 1
    %1538 = vsyncpa [#allocation6], 1
    %1539 = vsyncpa [#allocation9], 1
    %1540 = vsyncpa [#allocation12], 1
    %1541 = vsyncpa [#allocation4], 1

</llo_original>
